<compile_context>
chip_gen: v7x
topology: tpu7x:2x2x1
jax: 0.10.0
libtpu: 0.0.40
codegen_flags: <defaults>
</compile_context>

<pallas_src>
import functools

import jax
import jax.numpy as jnp
import numpy as np
from jax import lax
from jax.experimental import pallas as pl
from jax.experimental.pallas import tpu as pltpu


def _mha_kernel(xq_ref, xkv_ref, wqT_ref, bq_ref, wkvT_ref, bkv_ref,
                woT_ref, bo_ref, *refs, num_heads, hd_pad, need_weights,
                approx_recip):
    """One (batch, q-tile) grid step.

    xq_ref : (1, tq, D)       query rows of this tile (compute dtype)
    xkv_ref: (1, S,  D)       full sequence (source of K/V, compute dtype)
    kv_ref : (S, 2*qkv_pad)   VMEM scratch: K|V cache for the current batch
    ctx_ref: (tq, qkv_pad)    VMEM scratch: per-head contexts (lane aligned)
    """
    if need_weights:
        out_ref, attw_ref, kv_ref, ctx_ref = refs
    else:
        out_ref, kv_ref, ctx_ref = refs
        attw_ref = None

    cdt = kv_ref.dtype
    qkv_pad = num_heads * hd_pad

    # ---- once per batch element (qt == 0): fused K|V projection -----------
    @pl.when(pl.program_id(1) == 0)
    def _():
        kv_ref[...] = (jnp.dot(xkv_ref[0], wkvT_ref[...],
                               preferred_element_type=jnp.float32)
                       + bkv_ref[0]).astype(cdt)

    # ---- per q-tile: Q projection (softmax scaling folded into Wq/bq) -----
    q = (jnp.dot(xq_ref[0], wqT_ref[...], preferred_element_type=jnp.float32)
         + bq_ref[0]).astype(cdt)                               # (tq, qkv_pad)

    dn = (((1,), (1,)), ((), ()))        # contract last dims; no K transpose
    inv_heads = 1.0 / num_heads
    for h in range(num_heads):           # static, unrolled over heads
        lo = h * hd_pad                  # 128-lane-aligned offsets
        qh = q[:, lo:lo + hd_pad]                               # (tq, hd_pad)
        kh = kv_ref[:, lo:lo + hd_pad]                          # (S,  hd_pad)
        vh = kv_ref[:, qkv_pad + lo:qkv_pad + lo + hd_pad]      # (S,  hd_pad)

        s = lax.dot_general(qh, kh, dn, preferred_element_type=jnp.float32)
        m = jnp.max(s, axis=-1, keepdims=True)
        e = jnp.exp(s - m)
        denom = jnp.sum(e, axis=-1, keepdims=True)
        p = e * pl.reciprocal(denom, approx=approx_recip)       # (tq, S) f32

        # Lane-dense full-128 store of this head's context (no masked vst).
        ctx_ref[:, lo:lo + hd_pad] = jnp.dot(
            p.astype(cdt), vh, preferred_element_type=jnp.float32).astype(cdt)

        if need_weights:
            # Accumulate the head-average directly in the output VMEM block;
            # fold the 1/num_heads scale into the last accumulation.
            acc = p if h == 0 else attw_ref[0] + p
            if h == num_heads - 1:
                acc = acc * inv_heads
            attw_ref[0] = acc

    out = (jnp.dot(ctx_ref[...], woT_ref[...],
                   preferred_element_type=jnp.float32) + bo_ref[0])
    out_ref[0] = out.astype(out_ref.dtype)                      # (tq, out_dim)


def multihead_attention_super(query, in_proj_weight, in_proj_bias,
                              out_proj_weight, out_proj_bias, *,
                              num_heads, q_tile=None, need_weights=True,
                              exact=False):
    """query: (B, T, D) float32.

    Returns (attn (B, T, out_dim), attn_weights (B, T, T) or None), matching
    the PyTorch module's forward (self-attention, batchFirst).
    exact=True disables bf16 casts / approx reciprocal (tight-tolerance path).
    """
    B, T, D = query.shape
    qkv_dim = in_proj_weight.shape[0] // 3
    head_dim = qkv_dim // num_heads
    out_dim = out_proj_weight.shape[0]
    scaling = float(head_dim) ** -0.5

    compute_dtype = jnp.float32 if exact else jnp.bfloat16

    # Pad each head to a 128-lane boundary (free, aligned per-head slices).
    hd_pad = -(-head_dim // 128) * 128
    qkv_pad = num_heads * hd_pad

    # ---- one-time host-side parameter transforms ---------------------------
    def pad_head_rows(w):                       # (H*hd, X) -> (H*hd_pad, X)
        if hd_pad == head_dim:
            return w
        w = w.reshape(num_heads, head_dim, w.shape[-1])
        w = jnp.pad(w, ((0, 0), (0, hd_pad - head_dim), (0, 0)))
        return w.reshape(num_heads * hd_pad, w.shape[-1])

    def pad_head_vec(b):                        # (H*hd,) -> (H*hd_pad,)
        if hd_pad == head_dim:
            return b
        b = b.reshape(num_heads, head_dim)
        b = jnp.pad(b, ((0, 0), (0, hd_pad - head_dim)))
        return b.reshape(num_heads * hd_pad)

    wq = in_proj_weight[:qkv_dim] * scaling          # fold softmax scale in
    wk = in_proj_weight[qkv_dim:2 * qkv_dim]
    wv = in_proj_weight[2 * qkv_dim:]
    wqT = pad_head_rows(wq).T.astype(compute_dtype)                # (D, qkv_pad)
    wkvT = jnp.concatenate([pad_head_rows(wk), pad_head_rows(wv)],
                           axis=0).T.astype(compute_dtype)         # (D, 2*qkv_pad)
    woT = pad_head_rows(out_proj_weight.T).astype(compute_dtype)   # (qkv_pad, out_dim)

    bq = pad_head_vec(in_proj_bias[:qkv_dim] * scaling).reshape(1, qkv_pad)
    bkv = jnp.concatenate(
        [pad_head_vec(in_proj_bias[qkv_dim:2 * qkv_dim]),
         pad_head_vec(in_proj_bias[2 * qkv_dim:])]).reshape(1, 2 * qkv_pad)
    bo = out_proj_bias.reshape(1, out_dim)

    # Cast activations at the boundary (fast path: halves the xkv DMA bytes).
    x = query.astype(compute_dtype)

    # ---- per-generation VMEM budget & q-tile selection ----------------------
    try:
        vmem_cap = pltpu.get_tpu_info().vmem_capacity_bytes
    except Exception:
        vmem_cap = 64 * 1024 * 1024                # conservative default
    if vmem_cap >= 100 * 1024 * 1024:              # v5e / v6e: 128 MiB physical
        vmem_limit = 96 * 1024 * 1024
        default_tq = 256
    else:                                          # v7x: 64 MiB physical
        vmem_limit = 56 * 1024 * 1024
        default_tq = 128

    tq = min(q_tile if q_tile is not None else default_tq, T)
    if tq < T:
        tq = -(-tq // 8) * 8                       # sublane-align the q tile
        if tq >= T:
            tq = T
    n_qt = pl.cdiv(T, tq)   # ragged T: partial last q-tile (row-indep. math)

    kernel = functools.partial(
        _mha_kernel, num_heads=num_heads, hd_pad=hd_pad,
        need_weights=need_weights,
        approx_recip=(not exact) and (not need_weights))

    vmem_full = pl.BlockSpec(memory_space=pltpu.MemorySpace.VMEM)

    out_shapes = [jax.ShapeDtypeStruct((B, T, out_dim), query.dtype)]
    out_specs = [pl.BlockSpec((1, tq, out_dim), lambda b, qt: (b, qt, 0))]
    if need_weights:
        # TODO(synk): optionally emit attn_weights in bf16 to halve HBM traffic.
        out_shapes.append(jax.ShapeDtypeStruct((B, T, T), jnp.float32))
        out_specs.append(pl.BlockSpec((1, tq, T), lambda b, qt: (b, qt, 0)))

    results = pl.pallas_call(
        kernel,
        out_shape=tuple(out_shapes),
        grid=(B, n_qt),
        in_specs=[
            pl.BlockSpec((1, tq, D), lambda b, qt: (b, qt, 0)),   # q-tile rows
            pl.BlockSpec((1, T, D), lambda b, qt: (b, 0, 0)),     # full seq (K/V src)
            vmem_full, vmem_full,                                 # wqT, bq
            vmem_full, vmem_full,                                 # wkvT, bkv
            vmem_full, vmem_full,                                 # woT, bo
        ],
        out_specs=tuple(out_specs),
        scratch_shapes=[pltpu.VMEM((T, 2 * qkv_pad), compute_dtype),  # K|V cache
                        pltpu.VMEM((tq, qkv_pad), compute_dtype)],    # ctx slab
        compiler_params=pltpu.CompilerParams(
            dimension_semantics=("parallel", "arbitrary"),
            vmem_limit_bytes=vmem_limit),
    )(x, x, wqT, bq, wkvT, bkv, woT, bo)

    if need_weights:
        attn, attw = results
        return attn, attw
    return results[0], None


def _reference(query, in_proj_weight, in_proj_bias, out_proj_weight,
               out_proj_bias, num_heads):
    """Pure-JAX f32 transcription of the PyTorch forward (self-attn path)."""
    B, T, D = query.shape
    qkv_dim = in_proj_weight.shape[0] // 3
    hd = qkv_dim // num_heads
    scaling = float(hd) ** -0.5

    qkv = query @ in_proj_weight.T + in_proj_bias            # (B, T, 3*qkv)
    q, k, v = jnp.split(qkv, 3, axis=-1)
    q = q * scaling

    def to_heads(xx):
        xx = jnp.transpose(xx, (1, 0, 2))                    # (T, B, qkv)
        xx = xx.reshape(T, B * num_heads, hd)
        return jnp.transpose(xx, (1, 0, 2))                  # (B*H, T, hd)

    qh, kh, vh = to_heads(q), to_heads(k), to_heads(v)
    w = jnp.einsum('btd,bsd->bts', qh, kh)                   # (B*H, T, S)
    w = jax.nn.softmax(w, axis=-1)
    a = jnp.einsum('bts,bsd->btd', w, vh)                    # (B*H, T, hd)
    a = jnp.transpose(a, (1, 0, 2)).reshape(T, B, qkv_dim)
    a = a @ out_proj_weight.T + out_proj_bias                # (T, B, out_dim)
    a = jnp.transpose(a, (1, 0, 2))                          # (B, T, out_dim)
    w = w.reshape(B, num_heads, T, T).sum(axis=1) / num_heads
    return a, w


def _xavier_uniform(key, shape):
    fan_out, fan_in = shape
    bound = float(np.sqrt(6.0 / (fan_in + fan_out)))
    return jax.random.uniform(key, shape, jnp.float32, -bound, bound)


if __name__ == "__main__":
    # Small shapes consistent with the module: self-attention, batchFirst.
    B, T, D = 2, 8, 32           # batch, seq (tgt_len==src_len), embed_dim
    num_heads = 4                # head_dim = 8, qkv_dim = embed_dim = 32
    qkv_dim = D
    out_dim = D

    key = jax.random.PRNGKey(0)
    k_x, k_w1, k_w2, k_b1, k_b2 = jax.random.split(key, 5)

    query = jax.random.normal(k_x, (B, T, D), jnp.float32)

    # Weights: xavier_uniform as in reset_parameters(); biases made small
    # non-zero to exercise the fused / scaled / padded bias paths.
    in_proj_weight = _xavier_uniform(k_w1, (3 * qkv_dim, D))
    out_proj_weight = _xavier_uniform(k_w2, (out_dim, qkv_dim))
    in_proj_bias = 0.05 * jax.random.normal(k_b1, (3 * qkv_dim,), jnp.float32)
    out_proj_bias = 0.05 * jax.random.normal(k_b2, (out_dim,), jnp.float32)

    ref_attn, ref_attw = _reference(query, in_proj_weight, in_proj_bias,
                                    out_proj_weight, out_proj_bias, num_heads)

    # Exact (f32) path: structural correctness at tight tolerance.
    attn_x, attw_x = multihead_attention_super(
        query, in_proj_weight, in_proj_bias, out_proj_weight, out_proj_bias,
        num_heads=num_heads, exact=True)
    jax.block_until_ready((attn_x, attw_x))
    np.testing.assert_allclose(np.asarray(attn_x), np.asarray(ref_attn),
                               rtol=1e-5, atol=1e-5)
    np.testing.assert_allclose(np.asarray(attw_x), np.asarray(ref_attw),
                               rtol=1e-5, atol=1e-5)

    # Fast path (bf16 MXU operands, f32 accumulation, exact recip for the
    # user-visible attn_weights): tolerance loosened for bf16 rounding.
    attn, attw = multihead_attention_super(
        query, in_proj_weight, in_proj_bias, out_proj_weight, out_proj_bias,
        num_heads=num_heads)
    jax.block_until_ready((attn, attw))
    np.testing.assert_allclose(np.asarray(attn), np.asarray(ref_attn),
                               rtol=2e-2, atol=2e-2)
    np.testing.assert_allclose(np.asarray(attw), np.asarray(ref_attw),
                               rtol=2e-2, atol=2e-2)

    # Fast path without attn_weights (skips the O(T^2) writeback, approx EUP
    # reciprocal enabled).
    attn_nw, attw_nw = multihead_attention_super(
        query, in_proj_weight, in_proj_bias, out_proj_weight, out_proj_bias,
        num_heads=num_heads, need_weights=False)
    jax.block_until_ready(attn_nw)
    assert attw_nw is None
    np.testing.assert_allclose(np.asarray(attn_nw), np.asarray(ref_attn),
                               rtol=2e-2, atol=2e-2)

    print("KERNEL_OK")
</pallas_src>

<mosaic_0001>
module attributes {stable_mosaic.version = 11 : i64} {
  func.func @_mha_kernel(%arg0: i32, %arg1: i32, %arg2: memref<1x8x32xf32, #tpu.memory_space<vmem>>, %arg3: memref<1x8x32xf32, #tpu.memory_space<vmem>>, %arg4: memref<32x512xf32, #tpu.memory_space<vmem>>, %arg5: memref<1x512xf32, #tpu.memory_space<vmem>>, %arg6: memref<32x1024xf32, #tpu.memory_space<vmem>>, %arg7: memref<1x1024xf32, #tpu.memory_space<vmem>>, %arg8: memref<512x32xf32, #tpu.memory_space<vmem>>, %arg9: memref<1x32xf32, #tpu.memory_space<vmem>>, %arg10: memref<1x8x32xf32, #tpu.memory_space<vmem>>, %arg11: memref<1x8x8xf32, #tpu.memory_space<vmem>>, %arg12: memref<8x1024xf32, #tpu.memory_space<vmem>>, %arg13: memref<8x512xf32, #tpu.memory_space<vmem>>) attributes {dimension_semantics = [#tpu.dimension_semantics<parallel>, #tpu.dimension_semantics<arbitrary>], iteration_bounds = array<i64: 2, 1>, scalar_prefetch = 0 : i64, scratch_operands = 2 : i64, tpu.core_type = #tpu.core_type<tc>, window_params = [{transform_indices = @transform_0, window_bounds = array<i64: 1, 8, 32>}, {transform_indices = @transform_1, window_bounds = array<i64: 1, 8, 32>}, {pipeline_mode = #tpu.pipeline_mode<synchronous>, transform_indices = @transform_2, window_bounds = array<i64: 32, 512>}, {pipeline_mode = #tpu.pipeline_mode<synchronous>, transform_indices = @transform_3, window_bounds = array<i64: 1, 512>}, {pipeline_mode = #tpu.pipeline_mode<synchronous>, transform_indices = @transform_4, window_bounds = array<i64: 32, 1024>}, {pipeline_mode = #tpu.pipeline_mode<synchronous>, transform_indices = @transform_5, window_bounds = array<i64: 1, 1024>}, {pipeline_mode = #tpu.pipeline_mode<synchronous>, transform_indices = @transform_6, window_bounds = array<i64: 512, 32>}, {pipeline_mode = #tpu.pipeline_mode<synchronous>, transform_indices = @transform_7, window_bounds = array<i64: 1, 32>}, {transform_indices = @transform_8, window_bounds = array<i64: 1, 8, 32>}, {transform_indices = @transform_9, window_bounds = array<i64: 1, 8, 8>}]} {
    %c0_i32 = arith.constant 0 : i32
    %0 = arith.cmpi eq, %arg1, %c0_i32 : i32
    %1 = arith.extui %0 : i1 to i32
    %c0_i32_0 = arith.constant 0 : i32
    %2 = arith.cmpi ne, %1, %c0_i32_0 : i32
    scf.if %2 {
      %c0_72 = arith.constant 0 : index
      %c0_73 = arith.constant 0 : index
      %c0_74 = arith.constant 0 : index
      %110 = vector.load %arg3[%c0_72, %c0_73, %c0_74] : memref<1x8x32xf32, #tpu.memory_space<vmem>>, vector<1x8x32xf32>
      %111 = vector.shape_cast %110 : vector<1x8x32xf32> to vector<8x32xf32>
      %c0_75 = arith.constant 0 : index
      %c0_76 = arith.constant 0 : index
      %112 = vector.load %arg6[%c0_75, %c0_76] : memref<32x1024xf32, #tpu.memory_space<vmem>>, vector<32x1024xf32>
      %cst_77 = arith.constant dense<0.000000e+00> : vector<8x1024xf32>
      %113 = tpu.matmul %111, %112, %cst_77 {dimension_numbers = #tpu.dot_dimension_numbers<[1], [0], [0], [1], [0, 0, 1, 1], [], []>} : vector<8x32xf32>, vector<32x1024xf32>, vector<8x1024xf32> -> vector<8x1024xf32>
      %c0_78 = arith.constant 0 : index
      %c0_79 = arith.constant 0 : index
      %114 = vector.load %arg7[%c0_78, %c0_79] : memref<1x1024xf32, #tpu.memory_space<vmem>>, vector<1x1024xf32>
      %115 = vector.shape_cast %114 : vector<1x1024xf32> to vector<1024xf32>
      %116 = vector.shape_cast %115 : vector<1024xf32> to vector<1x1024xf32>
      %117 = vector.broadcast %116 : vector<1x1024xf32> to vector<8x1024xf32>
      %118 = arith.addf %113, %117 : vector<8x1024xf32>
      %c0_80 = arith.constant 0 : index
      %c0_81 = arith.constant 0 : index
      %119 = vector.load %arg12[%c0_80, %c0_81] : memref<8x1024xf32, #tpu.memory_space<vmem>>, vector<8x1024xf32>
      tpu.vector_store %arg12[%c0_80, %c0_81], %118 {strides = array<i32>} : memref<8x1024xf32, #tpu.memory_space<vmem>>, vector<8x1024xf32>,
    } else {
    }
    %c0 = arith.constant 0 : index
    %c0_1 = arith.constant 0 : index
    %c0_2 = arith.constant 0 : index
    %3 = vector.load %arg2[%c0, %c0_1, %c0_2] : memref<1x8x32xf32, #tpu.memory_space<vmem>>, vector<1x8x32xf32>
    %4 = vector.shape_cast %3 : vector<1x8x32xf32> to vector<8x32xf32>
    %c0_3 = arith.constant 0 : index
    %c0_4 = arith.constant 0 : index
    %5 = vector.load %arg4[%c0_3, %c0_4] : memref<32x512xf32, #tpu.memory_space<vmem>>, vector<32x512xf32>
    %cst = arith.constant dense<0.000000e+00> : vector<8x512xf32>
    %6 = tpu.matmul %4, %5, %cst {dimension_numbers = #tpu.dot_dimension_numbers<[1], [0], [0], [1], [0, 0, 1, 1], [], []>} : vector<8x32xf32>, vector<32x512xf32>, vector<8x512xf32> -> vector<8x512xf32>
    %c0_5 = arith.constant 0 : index
    %c0_6 = arith.constant 0 : index
    %7 = vector.load %arg5[%c0_5, %c0_6] : memref<1x512xf32, #tpu.memory_space<vmem>>, vector<1x512xf32>
    %8 = vector.shape_cast %7 : vector<1x512xf32> to vector<512xf32>
    %9 = vector.shape_cast %8 : vector<512xf32> to vector<1x512xf32>
    %10 = vector.broadcast %9 : vector<1x512xf32> to vector<8x512xf32>
    %11 = arith.addf %6, %10 : vector<8x512xf32>
    %12 = vector.extract_strided_slice %11 {offsets = [0, 0], sizes = [8, 128], strides = [1, 1]} : vector<8x512xf32> to vector<8x128xf32>
    %c0_7 = arith.constant 0 : index
    %c0_8 = arith.constant 0 : index
    %13 = vector.load %arg12[%c0_7, %c0_8] : memref<8x1024xf32, #tpu.memory_space<vmem>>, vector<8x128xf32>
    %c0_9 = arith.constant 0 : index
    %c512 = arith.constant 512 : index
    %14 = vector.load %arg12[%c0_9, %c512] : memref<8x1024xf32, #tpu.memory_space<vmem>>, vector<8x128xf32>
    %cst_10 = arith.constant dense<0.000000e+00> : vector<8x8xf32>
    %15 = tpu.matmul %12, %13, %cst_10 {dimension_numbers = #tpu.dot_dimension_numbers<[1], [1], [0], [0], [0, 0, 1, 0], [], []>} : vector<8x128xf32>, vector<8x128xf32>, vector<8x8xf32> -> vector<8x8xf32>
    %cst_11 = arith.constant dense<0xFF800000> : vector<8xf32>
    %16 = vector.multi_reduction <maximumf>, %15, %cst_11 [1] : vector<8x8xf32> to vector<8xf32>
    %17 = vector.shape_cast %16 : vector<8xf32> to vector<8x1xf32>
    %18 = vector.broadcast %17 : vector<8x1xf32> to vector<8x8xf32>
    %19 = arith.subf %15, %18 : vector<8x8xf32>
    %20 = math.exp %19 : vector<8x8xf32>
    %cst_12 = arith.constant dense<0.000000e+00> : vector<8xf32>
    %21 = vector.multi_reduction <add>, %20, %cst_12 [1] : vector<8x8xf32> to vector<8xf32>
    %22 = vector.shape_cast %21 : vector<8xf32> to vector<8x1xf32>
    %23 = tpu.reciprocal %22 : vector<8x1xf32> -> vector<8x1xf32>
    %24 = vector.broadcast %23 : vector<8x1xf32> to vector<8x8xf32>
    %25 = arith.mulf %20, %24 : vector<8x8xf32>
    %cst_13 = arith.constant dense<0.000000e+00> : vector<8x128xf32>
    %26 = tpu.matmul %25, %14, %cst_13 {dimension_numbers = #tpu.dot_dimension_numbers<[1], [0], [0], [1], [0, 0, 1, 1], [], []>} : vector<8x8xf32>, vector<8x128xf32>, vector<8x128xf32> -> vector<8x128xf32>
    %c0_14 = arith.constant 0 : index
    %c0_15 = arith.constant 0 : index
    %27 = vector.load %arg13[%c0_14, %c0_15] : memref<8x512xf32, #tpu.memory_space<vmem>>, vector<8x128xf32>
    tpu.vector_store %arg13[%c0_14, %c0_15], %26 {strides = array<i32>} : memref<8x512xf32, #tpu.memory_space<vmem>>, vector<8x128xf32>,
    %c0_16 = arith.constant 0 : index
    %c0_17 = arith.constant 0 : index
    %c0_18 = arith.constant 0 : index
    %28 = vector.load %arg11[%c0_16, %c0_17, %c0_18] : memref<1x8x8xf32, #tpu.memory_space<vmem>>, vector<1x8x8xf32>
    %29 = vector.shape_cast %28 : vector<1x8x8xf32> to vector<8x8xf32>
    %30 = vector.shape_cast %25 : vector<8x8xf32> to vector<1x8x8xf32>
    tpu.vector_store %arg11[%c0_16, %c0_17, %c0_18], %30 {strides = array<i32>} : memref<1x8x8xf32, #tpu.memory_space<vmem>>, vector<1x8x8xf32>,
    %31 = vector.extract_strided_slice %11 {offsets = [0, 128], sizes = [8, 128], strides = [1, 1]} : vector<8x512xf32> to vector<8x128xf32>
    %c0_19 = arith.constant 0 : index
    %c128 = arith.constant 128 : index
    %32 = vector.load %arg12[%c0_19, %c128] : memref<8x1024xf32, #tpu.memory_space<vmem>>, vector<8x128xf32>
    %c0_20 = arith.constant 0 : index
    %c640 = arith.constant 640 : index
    %33 = vector.load %arg12[%c0_20, %c640] : memref<8x1024xf32, #tpu.memory_space<vmem>>, vector<8x128xf32>
    %cst_21 = arith.constant dense<0.000000e+00> : vector<8x8xf32>
    %34 = tpu.matmul %31, %32, %cst_21 {dimension_numbers = #tpu.dot_dimension_numbers<[1], [1], [0], [0], [0, 0, 1, 0], [], []>} : vector<8x128xf32>, vector<8x128xf32>, vector<8x8xf32> -> vector<8x8xf32>
    %cst_22 = arith.constant dense<0xFF800000> : vector<8xf32>
    %35 = vector.multi_reduction <maximumf>, %34, %cst_22 [1] : vector<8x8xf32> to vector<8xf32>
    %36 = vector.shape_cast %35 : vector<8xf32> to vector<8x1xf32>
    %37 = vector.broadcast %36 : vector<8x1xf32> to vector<8x8xf32>
    %38 = arith.subf %34, %37 : vector<8x8xf32>
    %39 = math.exp %38 : vector<8x8xf32>
    %cst_23 = arith.constant dense<0.000000e+00> : vector<8xf32>
    %40 = vector.multi_reduction <add>, %39, %cst_23 [1] : vector<8x8xf32> to vector<8xf32>
    %41 = vector.shape_cast %40 : vector<8xf32> to vector<8x1xf32>
    %42 = tpu.reciprocal %41 : vector<8x1xf32> -> vector<8x1xf32>
    %43 = vector.broadcast %42 : vector<8x1xf32> to vector<8x8xf32>
    %44 = arith.mulf %39, %43 : vector<8x8xf32>
    %cst_24 = arith.constant dense<0.000000e+00> : vector<8x128xf32>
    %45 = tpu.matmul %44, %33, %cst_24 {dimension_numbers = #tpu.dot_dimension_numbers<[1], [0], [0], [1], [0, 0, 1, 1], [], []>} : vector<8x8xf32>, vector<8x128xf32>, vector<8x128xf32> -> vector<8x128xf32>
    %c0_25 = arith.constant 0 : index
    %c128_26 = arith.constant 128 : index
    %46 = vector.load %arg13[%c0_25, %c128_26] : memref<8x512xf32, #tpu.memory_space<vmem>>, vector<8x128xf32>
    tpu.vector_store %arg13[%c0_25, %c128_26], %45 {strides = array<i32>} : memref<8x512xf32, #tpu.memory_space<vmem>>, vector<8x128xf32>,
    %c0_27 = arith.constant 0 : index
    %c0_28 = arith.constant 0 : index
    %c0_29 = arith.constant 0 : index
    %47 = vector.load %arg11[%c0_27, %c0_28, %c0_29] : memref<1x8x8xf32, #tpu.memory_space<vmem>>, vector<1x8x8xf32>
    %48 = vector.shape_cast %47 : vector<1x8x8xf32> to vector<8x8xf32>
    %49 = arith.addf %48, %44 : vector<8x8xf32>
    %c0_30 = arith.constant 0 : index
    %c0_31 = arith.constant 0 : index
    %c0_32 = arith.constant 0 : index
    %50 = vector.load %arg11[%c0_30, %c0_31, %c0_32] : memref<1x8x8xf32, #tpu.memory_space<vmem>>, vector<1x8x8xf32>
    %51 = vector.shape_cast %50 : vector<1x8x8xf32> to vector<8x8xf32>
    %52 = vector.shape_cast %49 : vector<8x8xf32> to vector<1x8x8xf32>
    tpu.vector_store %arg11[%c0_30, %c0_31, %c0_32], %52 {strides = array<i32>} : memref<1x8x8xf32, #tpu.memory_space<vmem>>, vector<1x8x8xf32>,
    %53 = vector.extract_strided_slice %11 {offsets = [0, 256], sizes = [8, 128], strides = [1, 1]} : vector<8x512xf32> to vector<8x128xf32>
    %c0_33 = arith.constant 0 : index
    %c256 = arith.constant 256 : index
    %54 = vector.load %arg12[%c0_33, %c256] : memref<8x1024xf32, #tpu.memory_space<vmem>>, vector<8x128xf32>
    %c0_34 = arith.constant 0 : index
    %c768 = arith.constant 768 : index
    %55 = vector.load %arg12[%c0_34, %c768] : memref<8x1024xf32, #tpu.memory_space<vmem>>, vector<8x128xf32>
    %cst_35 = arith.constant dense<0.000000e+00> : vector<8x8xf32>
    %56 = tpu.matmul %53, %54, %cst_35 {dimension_numbers = #tpu.dot_dimension_numbers<[1], [1], [0], [0], [0, 0, 1, 0], [], []>} : vector<8x128xf32>, vector<8x128xf32>, vector<8x8xf32> -> vector<8x8xf32>
    %cst_36 = arith.constant dense<0xFF800000> : vector<8xf32>
    %57 = vector.multi_reduction <maximumf>, %56, %cst_36 [1] : vector<8x8xf32> to vector<8xf32>
    %58 = vector.shape_cast %57 : vector<8xf32> to vector<8x1xf32>
    %59 = vector.broadcast %58 : vector<8x1xf32> to vector<8x8xf32>
    %60 = arith.subf %56, %59 : vector<8x8xf32>
    %61 = math.exp %60 : vector<8x8xf32>
    %cst_37 = arith.constant dense<0.000000e+00> : vector<8xf32>
    %62 = vector.multi_reduction <add>, %61, %cst_37 [1] : vector<8x8xf32> to vector<8xf32>
    %63 = vector.shape_cast %62 : vector<8xf32> to vector<8x1xf32>
    %64 = tpu.reciprocal %63 : vector<8x1xf32> -> vector<8x1xf32>
    %65 = vector.broadcast %64 : vector<8x1xf32> to vector<8x8xf32>
    %66 = arith.mulf %61, %65 : vector<8x8xf32>
    %cst_38 = arith.constant dense<0.000000e+00> : vector<8x128xf32>
    %67 = tpu.matmul %66, %55, %cst_38 {dimension_numbers = #tpu.dot_dimension_numbers<[1], [0], [0], [1], [0, 0, 1, 1], [], []>} : vector<8x8xf32>, vector<8x128xf32>, vector<8x128xf32> -> vector<8x128xf32>
    %c0_39 = arith.constant 0 : index
    %c256_40 = arith.constant 256 : index
    %68 = vector.load %arg13[%c0_39, %c256_40] : memref<8x512xf32, #tpu.memory_space<vmem>>, vector<8x128xf32>
    tpu.vector_store %arg13[%c0_39, %c256_40], %67 {strides = array<i32>} : memref<8x512xf32, #tpu.memory_space<vmem>>, vector<8x128xf32>,
    %c0_41 = arith.constant 0 : index
    %c0_42 = arith.constant 0 : index
    %c0_43 = arith.constant 0 : index
    %69 = vector.load %arg11[%c0_41, %c0_42, %c0_43] : memref<1x8x8xf32, #tpu.memory_space<vmem>>, vector<1x8x8xf32>
    %70 = vector.shape_cast %69 : vector<1x8x8xf32> to vector<8x8xf32>
    %71 = arith.addf %70, %66 : vector<8x8xf32>
    %c0_44 = arith.constant 0 : index
    %c0_45 = arith.constant 0 : index
    %c0_46 = arith.constant 0 : index
    %72 = vector.load %arg11[%c0_44, %c0_45, %c0_46] : memref<1x8x8xf32, #tpu.memory_space<vmem>>, vector<1x8x8xf32>
    %73 = vector.shape_cast %72 : vector<1x8x8xf32> to vector<8x8xf32>
    %74 = vector.shape_cast %71 : vector<8x8xf32> to vector<1x8x8xf32>
    tpu.vector_store %arg11[%c0_44, %c0_45, %c0_46], %74 {strides = array<i32>} : memref<1x8x8xf32, #tpu.memory_space<vmem>>, vector<1x8x8xf32>,
    %75 = vector.extract_strided_slice %11 {offsets = [0, 384], sizes = [8, 128], strides = [1, 1]} : vector<8x512xf32> to vector<8x128xf32>
    %c0_47 = arith.constant 0 : index
    %c384 = arith.constant 384 : index
    %76 = vector.load %arg12[%c0_47, %c384] : memref<8x1024xf32, #tpu.memory_space<vmem>>, vector<8x128xf32>
    %c0_48 = arith.constant 0 : index
    %c896 = arith.constant 896 : index
    %77 = vector.load %arg12[%c0_48, %c896] : memref<8x1024xf32, #tpu.memory_space<vmem>>, vector<8x128xf32>
    %cst_49 = arith.constant dense<0.000000e+00> : vector<8x8xf32>
    %78 = tpu.matmul %75, %76, %cst_49 {dimension_numbers = #tpu.dot_dimension_numbers<[1], [1], [0], [0], [0, 0, 1, 0], [], []>} : vector<8x128xf32>, vector<8x128xf32>, vector<8x8xf32> -> vector<8x8xf32>
    %cst_50 = arith.constant dense<0xFF800000> : vector<8xf32>
    %79 = vector.multi_reduction <maximumf>, %78, %cst_50 [1] : vector<8x8xf32> to vector<8xf32>
    %80 = vector.shape_cast %79 : vector<8xf32> to vector<8x1xf32>
    %81 = vector.broadcast %80 : vector<8x1xf32> to vector<8x8xf32>
    %82 = arith.subf %78, %81 : vector<8x8xf32>
    %83 = math.exp %82 : vector<8x8xf32>
    %cst_51 = arith.constant dense<0.000000e+00> : vector<8xf32>
    %84 = vector.multi_reduction <add>, %83, %cst_51 [1] : vector<8x8xf32> to vector<8xf32>
    %85 = vector.shape_cast %84 : vector<8xf32> to vector<8x1xf32>
    %86 = tpu.reciprocal %85 : vector<8x1xf32> -> vector<8x1xf32>
    %87 = vector.broadcast %86 : vector<8x1xf32> to vector<8x8xf32>
    %88 = arith.mulf %83, %87 : vector<8x8xf32>
    %cst_52 = arith.constant dense<0.000000e+00> : vector<8x128xf32>
    %89 = tpu.matmul %88, %77, %cst_52 {dimension_numbers = #tpu.dot_dimension_numbers<[1], [0], [0], [1], [0, 0, 1, 1], [], []>} : vector<8x8xf32>, vector<8x128xf32>, vector<8x128xf32> -> vector<8x128xf32>
    %c0_53 = arith.constant 0 : index
    %c384_54 = arith.constant 384 : index
    %90 = vector.load %arg13[%c0_53, %c384_54] : memref<8x512xf32, #tpu.memory_space<vmem>>, vector<8x128xf32>
    tpu.vector_store %arg13[%c0_53, %c384_54], %89 {strides = array<i32>} : memref<8x512xf32, #tpu.memory_space<vmem>>, vector<8x128xf32>,
    %c0_55 = arith.constant 0 : index
    %c0_56 = arith.constant 0 : index
    %c0_57 = arith.constant 0 : index
    %91 = vector.load %arg11[%c0_55, %c0_56, %c0_57] : memref<1x8x8xf32, #tpu.memory_space<vmem>>, vector<1x8x8xf32>
    %92 = vector.shape_cast %91 : vector<1x8x8xf32> to vector<8x8xf32>
    %93 = arith.addf %92, %88 : vector<8x8xf32>
    %cst_58 = arith.constant 2.500000e-01 : f32
    %94 = vector.broadcast %cst_58 : f32 to vector<8x8xf32>
    %95 = arith.mulf %93, %94 : vector<8x8xf32>
    %c0_59 = arith.constant 0 : index
    %c0_60 = arith.constant 0 : index
    %c0_61 = arith.constant 0 : index
    %96 = vector.load %arg11[%c0_59, %c0_60, %c0_61] : memref<1x8x8xf32, #tpu.memory_space<vmem>>, vector<1x8x8xf32>
    %97 = vector.shape_cast %96 : vector<1x8x8xf32> to vector<8x8xf32>
    %98 = vector.shape_cast %95 : vector<8x8xf32> to vector<1x8x8xf32>
    tpu.vector_store %arg11[%c0_59, %c0_60, %c0_61], %98 {strides = array<i32>} : memref<1x8x8xf32, #tpu.memory_space<vmem>>, vector<1x8x8xf32>,
    %c0_62 = arith.constant 0 : index
    %c0_63 = arith.constant 0 : index
    %99 = vector.load %arg13[%c0_62, %c0_63] : memref<8x512xf32, #tpu.memory_space<vmem>>, vector<8x512xf32>
    %c0_64 = arith.constant 0 : index
    %c0_65 = arith.constant 0 : index
    %100 = vector.load %arg8[%c0_64, %c0_65] : memref<512x32xf32, #tpu.memory_space<vmem>>, vector<512x32xf32>
    %cst_66 = arith.constant dense<0.000000e+00> : vector<8x32xf32>
    %101 = tpu.matmul %99, %100, %cst_66 {dimension_numbers = #tpu.dot_dimension_numbers<[1], [0], [0], [1], [0, 0, 1, 1], [], []>} : vector<8x512xf32>, vector<512x32xf32>, vector<8x32xf32> -> vector<8x32xf32>
    %c0_67 = arith.constant 0 : index
    %c0_68 = arith.constant 0 : index
    %102 = vector.load %arg9[%c0_67, %c0_68] : memref<1x32xf32, #tpu.memory_space<vmem>>, vector<1x32xf32>
    %103 = vector.shape_cast %102 : vector<1x32xf32> to vector<32xf32>
    %104 = vector.shape_cast %103 : vector<32xf32> to vector<1x32xf32>
    %105 = vector.broadcast %104 : vector<1x32xf32> to vector<8x32xf32>
    %106 = arith.addf %101, %105 : vector<8x32xf32>
    %c0_69 = arith.constant 0 : index
    %c0_70 = arith.constant 0 : index
    %c0_71 = arith.constant 0 : index
    %107 = vector.load %arg10[%c0_69, %c0_70, %c0_71] : memref<1x8x32xf32, #tpu.memory_space<vmem>>, vector<1x8x32xf32>
    %108 = vector.shape_cast %107 : vector<1x8x32xf32> to vector<8x32xf32>
    %109 = vector.shape_cast %106 : vector<8x32xf32> to vector<1x8x32xf32>
    tpu.vector_store %arg10[%c0_69, %c0_70, %c0_71], %109 {strides = array<i32>} : memref<1x8x32xf32, #tpu.memory_space<vmem>>, vector<1x8x32xf32>,
    return
  }
  func.func @transform_0(%arg0: i32, %arg1: i32) -> (i32, i32, i32) {
    %c0_i32 = arith.constant 0 : i32
    %c0_i32_0 = arith.constant 0 : i32
    return %arg0, %arg1, %c0_i32 : i32, i32, i32
  }
  func.func @transform_1(%arg0: i32, %arg1: i32) -> (i32, i32, i32) {
    %c0_i32 = arith.constant 0 : i32
    %c0_i32_0 = arith.constant 0 : i32
    %c0_i32_1 = arith.constant 0 : i32
    return %arg0, %c0_i32, %c0_i32_0 : i32, i32, i32
  }
  func.func @transform_2(%arg0: i32, %arg1: i32) -> (i32, i32) {
    %c0_i32 = arith.constant 0 : i32
    %c0_i32_0 = arith.constant 0 : i32
    %c0_i32_1 = arith.constant 0 : i32
    return %c0_i32, %c0_i32_0 : i32, i32
  }
  func.func @transform_3(%arg0: i32, %arg1: i32) -> (i32, i32) {
    %c0_i32 = arith.constant 0 : i32
    %c0_i32_0 = arith.constant 0 : i32
    %c0_i32_1 = arith.constant 0 : i32
    return %c0_i32, %c0_i32_0 : i32, i32
  }
  func.func @transform_4(%arg0: i32, %arg1: i32) -> (i32, i32) {
    %c0_i32 = arith.constant 0 : i32
    %c0_i32_0 = arith.constant 0 : i32
    %c0_i32_1 = arith.constant 0 : i32
    return %c0_i32, %c0_i32_0 : i32, i32
  }
  func.func @transform_5(%arg0: i32, %arg1: i32) -> (i32, i32) {
    %c0_i32 = arith.constant 0 : i32
    %c0_i32_0 = arith.constant 0 : i32
    %c0_i32_1 = arith.constant 0 : i32
    return %c0_i32, %c0_i32_0 : i32, i32
  }
  func.func @transform_6(%arg0: i32, %arg1: i32) -> (i32, i32) {
    %c0_i32 = arith.constant 0 : i32
    %c0_i32_0 = arith.constant 0 : i32
    %c0_i32_1 = arith.constant 0 : i32
    return %c0_i32, %c0_i32_0 : i32, i32
  }
  func.func @transform_7(%arg0: i32, %arg1: i32) -> (i32, i32) {
    %c0_i32 = arith.constant 0 : i32
    %c0_i32_0 = arith.constant 0 : i32
    %c0_i32_1 = arith.constant 0 : i32
    return %c0_i32, %c0_i32_0 : i32, i32
  }
  func.func @transform_8(%arg0: i32, %arg1: i32) -> (i32, i32, i32) {
    %c0_i32 = arith.constant 0 : i32
    %c0_i32_0 = arith.constant 0 : i32
    return %arg0, %arg1, %c0_i32 : i32, i32, i32
  }
  func.func @transform_9(%arg0: i32, %arg1: i32) -> (i32, i32, i32) {
    %c0_i32 = arith.constant 0 : i32
    %c0_i32_0 = arith.constant 0 : i32
    return %arg0, %arg1, %c0_i32 : i32, i32, i32
  }
}

</mosaic_0001>

<llo_original>
// kernel: tpu_custom_call.1
$region0: #{tpu_custom_call.1}
  #allocation0 [shape = 'u32[]', space=smem, size = 0x4, offset = 0x4, fixed_abs, tag = 'smem constant byte address 0x4 - core index']
  #allocation1 [shape = 'u32[144,128]{1,0:T(1,128)}', space=vmem, size = 0x12000, scoped, tag = 'internal scratch']
  #allocation2 [shape = 'f32[8,1024]{1,0:T(8,128)}', space=vmem, size = 0x8000, scoped, tag = 'scratch operand']
  #allocation3 [shape = 'f32[8,512]{1,0:T(8,128)}', space=vmem, size = 0x4000, scoped, tag = 'scratch operand']
  %s0 = inlined_call_operand.vmem [shape: f32[2,8,32], index: 0, kind: input, shape index: {}]
  %s1 = inlined_call_operand.vmem [shape: f32[2,8,32], index: 1, kind: input, shape index: {}]
  %s2 = inlined_call_operand.vmem [shape: f32[32,512], index: 2, kind: input, shape index: {}]
  %s3 = inlined_call_operand.vmem [shape: f32[1,512], index: 3, kind: input, shape index: {}]
  %s4 = inlined_call_operand.vmem [shape: f32[32,1024], index: 4, kind: input, shape index: {}]
  %s5 = inlined_call_operand.vmem [shape: f32[1,1024], index: 5, kind: input, shape index: {}]
  %s6 = inlined_call_operand.vmem [shape: f32[512,32], index: 6, kind: input, shape index: {}]
  %s7 = inlined_call_operand.vmem [shape: f32[1,32], index: 7, kind: input, shape index: {}]
  %s8 = inlined_call_operand.hbm [shape: f32[2,8,32], index: 8, kind: output, shape index: {0}]
  %s9 = inlined_call_operand.hbm [shape: f32[2,8,8], index: 9, kind: output, shape index: {1}]
  %10 = xla_tuple %s8, %s9
  %s11 = sld [smem:[#allocation0]]
  $region77: #{tpu_custom_call.1} parent=0
    _
  %s13 = ssub.s32 1, %s11
  %s14 = scalar_select 0, %s13, %s11
  $region1: #{tpu_custom_call.1} parent=0
    #allocation4 [shape = 'u8[8192]{0}', space=vmem, size = 0x2000, scoped, tag = 'output window, operand 0']
    #allocation5 [shape = 's32[2]{0}', space=sflag, size = 0x8, scoped, tag = 'scoped memory for tpu_custom_call.1']
    #allocation6 [shape = 'u8[8192]{0}', space=vmem, size = 0x2000, scoped, tag = 'output window, operand 1']
    #allocation7 [shape = 's32[2]{0}', space=sflag, size = 0x8, scoped, tag = 'scoped memory for tpu_custom_call.1']
    %15 = vsyncpa [#allocation5], 0
    %s16 = scalar_lea.sflag [#allocation5], 1
    %17 = vsyncpa %s16, 0
    %18 = vsyncpa [#allocation7], 0
    %s19 = scalar_lea.sflag [#allocation7], 1
    %20 = vsyncpa %s19, 0
    loop: start=0, step=1, limit=4
    $region2: #{tpu_custom_call.1} parent=1 // loop_pre_header
      _
    $region3: #{tpu_custom_call.1} parent=1 // loop_header
      %s22 = sphi 0, %s26
      %p23 = scmp.ge.s32.totalorder %s22, 4
      %s29 = sphi 0, %s41
      %s30 = sphi 0, %s37
      %s31 = sphi 0, %s29
      %s32 = sphi 0, %s30
      %s33 = sphi 0, %s31
      %s34 = sphi 0, %s32
      %s46 = sphi 0, %s48
      %s49 = sphi 0, %s46
      %s50 = sphi 0, %s49
      %s66 = sphi 0, %s50
      %s72 = sphi 0, %s74
      %s75 = sphi 0, %s72
      %s76 = sphi 0, %s75
      %s92 = sphi 0, %s76
      %s96 = sphi 0, %s96
      %s98 = sphi 0, %s96
      %s99 = sphi 0, %s98
      %s113 = sphi 0, %s99
      %s117 = sphi 0, %s117
      %s119 = sphi 0, %s117
      %s120 = sphi 0, %s119
      %s134 = sphi 0, %s120
      %s138 = sphi 0, %s138
      %s140 = sphi 0, %s138
      %s141 = sphi 0, %s140
      %s155 = sphi 0, %s141
      %s159 = sphi 0, %s159
      %s161 = sphi 0, %s159
      %s162 = sphi 0, %s161
      %s176 = sphi 0, %s162
      %s180 = sphi 0, %s180
      %s182 = sphi 0, %s180
      %s183 = sphi 0, %s182
      %s197 = sphi 0, %s183
      %s201 = sphi 0, %s201
      %s203 = sphi 0, %s201
      %s204 = sphi 0, %s203
      %s218 = sphi 0, %s204
      %s226 = sphi 0, %s228
      %s229 = sphi 0, %s226
      %s230 = sphi 0, %s229
      %s246 = sphi 0, %s230
      %s254 = sphi 0, %s256
      %s257 = sphi 0, %s254
      %s258 = sphi 0, %s257
      %s274 = sphi 0, %s258
    $region4: #{tpu_custom_call.1} parent=1 // loop_header_branch
      %25 = sbr.rel (%p23) target = $region8
    $region5: #{tpu_custom_call.1} parent=1 // loop_body
      %s27 = ssub.s32 %s22, 1
      %s28 = ssub.s32 %s22, 2
      %s35 = sadd.s32 1, %s30
      %p36 = scmp.ge.s32.totalorder %s35, 1
      %s37 = scalar_select %p36, 0, %s35
      %s38 = sadd.s32 1, %s29
      %s39 = scalar_select %p36, %s38, %s29
      %p40 = scmp.ge.s32.totalorder %s39, 2
      %s41 = scalar_select %p40, 0, %s39
      %s42 = ssub.s32 %s29, %s41
      %s43 = ssub.s32 %s30, %s37
      %s44 = sor.u32 %s42, %s43
      %p45 = scmp.eq.s32.totalorder %s44, 0
      %s47 = sadd.s32 %s46, 1
      %s48 = scalar_select %p45, %s46, %s47
      %p51 = pneg %p45
      %p52 = scmp.eq.s32.totalorder %s22, 1
      %p53 = por %p51, %p52
      %p54 = scmp.ne.s32.totalorder %s46, %s49
      %p55 = scmp.eq.s32.totalorder %s22, 0
      %p56 = por %p54, %p55
      %p57 = scmp.ne.s32.totalorder %s46, %s49
      %p58 = scmp.eq.s32.totalorder %s27, 1
      %p59 = por %p57, %p58
      %p60 = scmp.ne.s32.totalorder %s49, %s50
      %p61 = scmp.eq.s32.totalorder %s27, 0
      %p62 = por %p60, %p61
      %p63 = scmp.ne.s32.totalorder %s49, %s50
      %p64 = scmp.eq.s32.totalorder %s28, 1
      %p65 = por %p63, %p64
      %p67 = scmp.ne.s32.totalorder %s50, %s66
      %p68 = scmp.eq.s32.totalorder %s28, 0
      %p69 = por %p67, %p68
      %s70 = ssub.s32 %s29, %s41
      %p71 = scmp.eq.s32.totalorder %s70, 0
      %s73 = sadd.s32 %s72, 1
      %s74 = scalar_select %p71, %s72, %s73
      %p77 = pneg %p71
      %p78 = scmp.eq.s32.totalorder %s22, 1
      %p79 = por %p77, %p78
      %p80 = scmp.ne.s32.totalorder %s72, %s75
      %p81 = scmp.eq.s32.totalorder %s22, 0
      %p82 = por %p80, %p81
      %p83 = scmp.ne.s32.totalorder %s72, %s75
      %p84 = scmp.eq.s32.totalorder %s27, 1
      %p85 = por %p83, %p84
      %p86 = scmp.ne.s32.totalorder %s75, %s76
      %p87 = scmp.eq.s32.totalorder %s27, 0
      %p88 = por %p86, %p87
      %p89 = scmp.ne.s32.totalorder %s75, %s76
      %p90 = scmp.eq.s32.totalorder %s28, 1
      %p91 = por %p89, %p90
      %p93 = scmp.ne.s32.totalorder %s76, %s92
      %p94 = scmp.eq.s32.totalorder %s28, 0
      %p95 = por %p93, %p94
      %s97 = sadd.s32 %s96, 1
      %p100 = scmp.eq.s32.totalorder %s22, 1
      %p101 = scmp.ne.s32.totalorder %s96, %s98
      %p102 = scmp.eq.s32.totalorder %s22, 0
      %p103 = por %p101, %p102
      %p104 = scmp.ne.s32.totalorder %s96, %s98
      %p105 = scmp.eq.s32.totalorder %s27, 1
      %p106 = por %p104, %p105
      %p107 = scmp.ne.s32.totalorder %s98, %s99
      %p108 = scmp.eq.s32.totalorder %s27, 0
      %p109 = por %p107, %p108
      %p110 = scmp.ne.s32.totalorder %s98, %s99
      %p111 = scmp.eq.s32.totalorder %s28, 1
      %p112 = por %p110, %p111
      %p114 = scmp.ne.s32.totalorder %s99, %s113
      %p115 = scmp.eq.s32.totalorder %s28, 0
      %p116 = por %p114, %p115
      %s118 = sadd.s32 %s117, 1
      %p121 = scmp.eq.s32.totalorder %s22, 1
      %p122 = scmp.ne.s32.totalorder %s117, %s119
      %p123 = scmp.eq.s32.totalorder %s22, 0
      %p124 = por %p122, %p123
      %p125 = scmp.ne.s32.totalorder %s117, %s119
      %p126 = scmp.eq.s32.totalorder %s27, 1
      %p127 = por %p125, %p126
      %p128 = scmp.ne.s32.totalorder %s119, %s120
      %p129 = scmp.eq.s32.totalorder %s27, 0
      %p130 = por %p128, %p129
      %p131 = scmp.ne.s32.totalorder %s119, %s120
      %p132 = scmp.eq.s32.totalorder %s28, 1
      %p133 = por %p131, %p132
      %p135 = scmp.ne.s32.totalorder %s120, %s134
      %p136 = scmp.eq.s32.totalorder %s28, 0
      %p137 = por %p135, %p136
      %s139 = sadd.s32 %s138, 1
      %p142 = scmp.eq.s32.totalorder %s22, 1
      %p143 = scmp.ne.s32.totalorder %s138, %s140
      %p144 = scmp.eq.s32.totalorder %s22, 0
      %p145 = por %p143, %p144
      %p146 = scmp.ne.s32.totalorder %s138, %s140
      %p147 = scmp.eq.s32.totalorder %s27, 1
      %p148 = por %p146, %p147
      %p149 = scmp.ne.s32.totalorder %s140, %s141
      %p150 = scmp.eq.s32.totalorder %s27, 0
      %p151 = por %p149, %p150
      %p152 = scmp.ne.s32.totalorder %s140, %s141
      %p153 = scmp.eq.s32.totalorder %s28, 1
      %p154 = por %p152, %p153
      %p156 = scmp.ne.s32.totalorder %s141, %s155
      %p157 = scmp.eq.s32.totalorder %s28, 0
      %p158 = por %p156, %p157
      %s160 = sadd.s32 %s159, 1
      %p163 = scmp.eq.s32.totalorder %s22, 1
      %p164 = scmp.ne.s32.totalorder %s159, %s161
      %p165 = scmp.eq.s32.totalorder %s22, 0
      %p166 = por %p164, %p165
      %p167 = scmp.ne.s32.totalorder %s159, %s161
      %p168 = scmp.eq.s32.totalorder %s27, 1
      %p169 = por %p167, %p168
      %p170 = scmp.ne.s32.totalorder %s161, %s162
      %p171 = scmp.eq.s32.totalorder %s27, 0
      %p172 = por %p170, %p171
      %p173 = scmp.ne.s32.totalorder %s161, %s162
      %p174 = scmp.eq.s32.totalorder %s28, 1
      %p175 = por %p173, %p174
      %p177 = scmp.ne.s32.totalorder %s162, %s176
      %p178 = scmp.eq.s32.totalorder %s28, 0
      %p179 = por %p177, %p178
      %s181 = sadd.s32 %s180, 1
      %p184 = scmp.eq.s32.totalorder %s22, 1
      %p185 = scmp.ne.s32.totalorder %s180, %s182
      %p186 = scmp.eq.s32.totalorder %s22, 0
      %p187 = por %p185, %p186
      %p188 = scmp.ne.s32.totalorder %s180, %s182
      %p189 = scmp.eq.s32.totalorder %s27, 1
      %p190 = por %p188, %p189
      %p191 = scmp.ne.s32.totalorder %s182, %s183
      %p192 = scmp.eq.s32.totalorder %s27, 0
      %p193 = por %p191, %p192
      %p194 = scmp.ne.s32.totalorder %s182, %s183
      %p195 = scmp.eq.s32.totalorder %s28, 1
      %p196 = por %p194, %p195
      %p198 = scmp.ne.s32.totalorder %s183, %s197
      %p199 = scmp.eq.s32.totalorder %s28, 0
      %p200 = por %p198, %p199
      %s202 = sadd.s32 %s201, 1
      %p205 = scmp.eq.s32.totalorder %s22, 1
      %p206 = scmp.ne.s32.totalorder %s201, %s203
      %p207 = scmp.eq.s32.totalorder %s22, 0
      %p208 = por %p206, %p207
      %p209 = scmp.ne.s32.totalorder %s201, %s203
      %p210 = scmp.eq.s32.totalorder %s27, 1
      %p211 = por %p209, %p210
      %p212 = scmp.ne.s32.totalorder %s203, %s204
      %p213 = scmp.eq.s32.totalorder %s27, 0
      %p214 = por %p212, %p213
      %p215 = scmp.ne.s32.totalorder %s203, %s204
      %p216 = scmp.eq.s32.totalorder %s28, 1
      %p217 = por %p215, %p216
      %p219 = scmp.ne.s32.totalorder %s204, %s218
      %p220 = scmp.eq.s32.totalorder %s28, 0
      %p221 = por %p219, %p220
      %s222 = ssub.s32 %s29, %s41
      %s223 = ssub.s32 %s30, %s37
      %s224 = sor.u32 %s222, %s223
      %p225 = scmp.eq.s32.totalorder %s224, 0
      %s227 = sadd.s32 %s226, 1
      %s228 = scalar_select %p225, %s226, %s227
      %p231 = pneg %p225
      %p232 = scmp.eq.s32.totalorder %s22, 1
      %p233 = por %p231, %p232
      %p234 = scmp.ne.s32.totalorder %s226, %s229
      %p235 = scmp.eq.s32.totalorder %s22, 0
      %p236 = por %p234, %p235
      %p237 = scmp.ne.s32.totalorder %s226, %s229
      %p238 = scmp.eq.s32.totalorder %s27, 1
      %p239 = por %p237, %p238
      %p240 = scmp.ne.s32.totalorder %s229, %s230
      %p241 = scmp.eq.s32.totalorder %s27, 0
      %p242 = por %p240, %p241
      %p243 = scmp.ne.s32.totalorder %s229, %s230
      %p244 = scmp.eq.s32.totalorder %s28, 1
      %p245 = por %p243, %p244
      %p247 = scmp.ne.s32.totalorder %s230, %s246
      %p248 = scmp.eq.s32.totalorder %s28, 0
      %p249 = por %p247, %p248
      %s250 = ssub.s32 %s29, %s41
      %s251 = ssub.s32 %s30, %s37
      %s252 = sor.u32 %s250, %s251
      %p253 = scmp.eq.s32.totalorder %s252, 0
      %s255 = sadd.s32 %s254, 1
      %s256 = scalar_select %p253, %s254, %s255
      %p259 = pneg %p253
      %p260 = scmp.eq.s32.totalorder %s22, 1
      %p261 = por %p259, %p260
      %p262 = scmp.ne.s32.totalorder %s254, %s257
      %p263 = scmp.eq.s32.totalorder %s22, 0
      %p264 = por %p262, %p263
      %p265 = scmp.ne.s32.totalorder %s254, %s257
      %p266 = scmp.eq.s32.totalorder %s27, 1
      %p267 = por %p265, %p266
      %p268 = scmp.ne.s32.totalorder %s257, %s258
      %p269 = scmp.eq.s32.totalorder %s27, 0
      %p270 = por %p268, %p269
      %p271 = scmp.ne.s32.totalorder %s257, %s258
      %p272 = scmp.eq.s32.totalorder %s28, 1
      %p273 = por %p271, %p272
      %p275 = scmp.ne.s32.totalorder %s258, %s274
      %p276 = scmp.eq.s32.totalorder %s28, 0
      %p277 = por %p275, %p276
      %p278 = scmp.le.s32.totalorder 1, %s22
      %p279 = scmp.lt.s32.totalorder %s22, 3
      %p280 = pnand %p278, %p279
      %p281 = pneg %p280
      // Predicated region
      $region9: #{tpu_custom_call.1} parent=5 // pred_check
        _
      $region10: #{tpu_custom_call.1} parent=5 // pred_check_branch
        %283 = sbr.rel (%p280) target = $region12
      $region11: #{tpu_custom_call.1} parent=5 // pred_region
        %s284 = ssub.s32 %s22, 1
        // Predicated region
        $region13: #{tpu_custom_call.1} parent=11 // pred_check
          %p285 = pneg %p109
        $region14: #{tpu_custom_call.1} parent=11 // pred_check_branch
          %287 = sbr.rel (%p285) target = $region16
        $region15: #{tpu_custom_call.1} parent=11 // pred_region
          _
        $region16: #{tpu_custom_call.1} parent=11 // pred_fallthru
          _
        // Predicated region
        $region17: #{tpu_custom_call.1} parent=11 // pred_check
          %p288 = pneg %p130
        $region18: #{tpu_custom_call.1} parent=11 // pred_check_branch
          %290 = sbr.rel (%p288) target = $region20
        $region19: #{tpu_custom_call.1} parent=11 // pred_region
          _
        $region20: #{tpu_custom_call.1} parent=11 // pred_fallthru
          _
        // Predicated region
        $region21: #{tpu_custom_call.1} parent=11 // pred_check
          %p291 = pneg %p151
        $region22: #{tpu_custom_call.1} parent=11 // pred_check_branch
          %293 = sbr.rel (%p291) target = $region24
        $region23: #{tpu_custom_call.1} parent=11 // pred_region
          _
        $region24: #{tpu_custom_call.1} parent=11 // pred_fallthru
          _
        // Predicated region
        $region25: #{tpu_custom_call.1} parent=11 // pred_check
          %p294 = pneg %p172
        $region26: #{tpu_custom_call.1} parent=11 // pred_check_branch
          %296 = sbr.rel (%p294) target = $region28
        $region27: #{tpu_custom_call.1} parent=11 // pred_region
          _
        $region28: #{tpu_custom_call.1} parent=11 // pred_fallthru
          _
        // Predicated region
        $region29: #{tpu_custom_call.1} parent=11 // pred_check
          %p297 = pneg %p193
        $region30: #{tpu_custom_call.1} parent=11 // pred_check_branch
          %299 = sbr.rel (%p297) target = $region32
        $region31: #{tpu_custom_call.1} parent=11 // pred_region
          _
        $region32: #{tpu_custom_call.1} parent=11 // pred_fallthru
          _
        // Predicated region
        $region33: #{tpu_custom_call.1} parent=11 // pred_check
          %p300 = pneg %p214
        $region34: #{tpu_custom_call.1} parent=11 // pred_check_branch
          %302 = sbr.rel (%p300) target = $region36
        $region35: #{tpu_custom_call.1} parent=11 // pred_region
          _
        $region36: #{tpu_custom_call.1} parent=11 // pred_fallthru
          _
      $region12: #{tpu_custom_call.1} parent=5 // pred_fallthru
        _
      %p303 = scmp.lt.s32.totalorder %s22, 2
      // Predicated region
      $region37: #{tpu_custom_call.1} parent=5 // pred_check
        %p304 = pneg %p303
      $region38: #{tpu_custom_call.1} parent=5 // pred_check_branch
        %306 = sbr.rel (%p304) target = $region40
      $region39: #{tpu_custom_call.1} parent=5 // pred_region
        // Predicated region
        $region41: #{tpu_custom_call.1} parent=39 // pred_check
          %p307 = pneg %p56
        $region42: #{tpu_custom_call.1} parent=39 // pred_check_branch
          %309 = sbr.rel (%p307) target = $region44
        $region43: #{tpu_custom_call.1} parent=39 // pred_region
          %p310 = scmp.lt.s32.totalorder %s29, 1
          %s311 = scalar_select %p310, %s29, 1
          %p312 = scmp.lt.s32.totalorder %s30, 0
          %s313 = scalar_select %p312, %s30, 0
          %s314 = sadd.s32 %s313, %s311
          %s315 = smul.addr %s314, 8
          %s316 = scalar_lea.vmem %s0, %s315
        $region44: #{tpu_custom_call.1} parent=39 // pred_fallthru
          _
        // Predicated region
        $region45: #{tpu_custom_call.1} parent=39 // pred_check
          %p317 = pneg %p82
        $region46: #{tpu_custom_call.1} parent=39 // pred_check_branch
          %319 = sbr.rel (%p317) target = $region48
        $region47: #{tpu_custom_call.1} parent=39 // pred_region
          %p320 = scmp.lt.s32.totalorder %s29, 1
          %s321 = scalar_select %p320, %s29, 1
          %s322 = smul.addr %s321, 8
          %s323 = scalar_lea.vmem %s1, %s322
        $region48: #{tpu_custom_call.1} parent=39 // pred_fallthru
          _
      $region40: #{tpu_custom_call.1} parent=5 // pred_fallthru
        _
      %p324 = scmp.le.s32.totalorder 1, %s22
      %p325 = scmp.lt.s32.totalorder %s22, 3
      %p326 = pnand %p324, %p325
      %p327 = pneg %p326
      // Predicated region
      $region49: #{tpu_custom_call.1} parent=5 // pred_check
        _
      $region50: #{tpu_custom_call.1} parent=5 // pred_check_branch
        %329 = sbr.rel (%p326) target = $region52
      $region51: #{tpu_custom_call.1} parent=5 // pred_region
        %s330 = ssub.s32 %s22, 1
        %p331 = scmp.lt.s32.totalorder %s31, 1
        %s332 = scalar_select %p331, %s31, 1
        %p333 = scmp.lt.s32.totalorder %s32, 0
        %s334 = scalar_select %p333, %s32, 0
        %s335 = sadd.s32 %s334, %s332
        %s336 = smul.addr %s335, 8
        %s337 = scalar_lea.vmem %s0, %s336
        %p338 = pneg %p62
        %p339 = pneg %p59
        %p340 = scmp.lt.s32.totalorder %s31, 1
        %s341 = scalar_select %p340, %s31, 1
        %s342 = smul.addr %s341, 8
        %s343 = scalar_lea.vmem %s1, %s342
        %p344 = pneg %p88
        %p345 = pneg %p85
        %p346 = pneg %p109
        %p347 = pneg %p106
        %p348 = pneg %p130
        %p349 = pneg %p127
        %p350 = pneg %p151
        %p351 = pneg %p148
        %p352 = pneg %p172
        %p353 = pneg %p169
        %p354 = pneg %p193
        %p355 = pneg %p190
        %p356 = pneg %p214
        %p357 = pneg %p211
        %p358 = pneg %p242
        %p359 = pneg %p239
        %s360 = sand.u32 %s229, 1
        %s361 = scalar_lea.sflag [#allocation5], %s360
        %s362 = sand.u32 %s229, 1
        %s363 = smul.addr %s362, 8
        %s364 = scalar_lea.vmem [#allocation4], %s363
        %p365 = pneg %p270
        %p366 = pneg %p267
        %s367 = sand.u32 %s257, 1
        %s368 = scalar_lea.sflag [#allocation7], %s367
        %s369 = sand.u32 %s257, 1
        %s370 = smul.addr %s369, 8
        %s371 = scalar_lea.vmem [#allocation6], %s370
        %p372 = scmp.lt.s32.totalorder %s31, 1
        %s373 = scalar_select %p372, %s31, 1
        %p374 = scmp.lt.s32.totalorder %s32, 0
        %s375 = scalar_select %p374, %s32, 0
        %s376 = sadd.s32 %s375, %s373
        %s377 = smul.addr %s376, 8
        %s378 = scalar_lea.vmem %s0, %s377
        %p379 = scmp.lt.s32.totalorder %s31, 1
        %s380 = scalar_select %p379, %s31, 1
        %s381 = smul.addr %s380, 8
        %s382 = scalar_lea.vmem %s1, %s381
        %p383 = scmp.eq.s32.totalorder %s32, 0
        // Predicated region
        $region53: #{tpu_custom_call.1} parent=51 // pred_check
          %p384 = pneg %p383
        $region54: #{tpu_custom_call.1} parent=51 // pred_check_branch
          %386 = sbr.rel (%p384) target = $region56
        $region55: #{tpu_custom_call.1} parent=51 // pred_region
          %v387 = vld [vmem:[%s382] sm:$0xff]
          %v388 = vld [vmem:[%s4] sm:$0xff]
          %v389 = vld [vmem:[%s4 + $0x8] sm:$0xff]
          %v390 = vld [vmem:[%s4 + $0x10] sm:$0xff]
          %v391 = vld [vmem:[%s4 + $0x18] sm:$0xff]
          %v392 = vld [vmem:[%s4 + $0x20] sm:$0xff]
          %v393 = vld [vmem:[%s4 + $0x28] sm:$0xff]
          %v394 = vld [vmem:[%s4 + $0x30] sm:$0xff]
          %v395 = vld [vmem:[%s4 + $0x38] sm:$0xff]
          %v396 = vld [vmem:[%s4 + $0x40] sm:$0xff]
          %v397 = vld [vmem:[%s4 + $0x48] sm:$0xff]
          %v398 = vld [vmem:[%s4 + $0x50] sm:$0xff]
          %v399 = vld [vmem:[%s4 + $0x58] sm:$0xff]
          %v400 = vld [vmem:[%s4 + $0x60] sm:$0xff]
          %v401 = vld [vmem:[%s4 + $0x68] sm:$0xff]
          %v402 = vld [vmem:[%s4 + $0x70] sm:$0xff]
          %v403 = vld [vmem:[%s4 + $0x78] sm:$0xff]
          %v404 = vld [vmem:[%s4 + $0x80] sm:$0xff]
          %v405 = vld [vmem:[%s4 + $0x88] sm:$0xff]
          %v406 = vld [vmem:[%s4 + $0x90] sm:$0xff]
          %v407 = vld [vmem:[%s4 + $0x98] sm:$0xff]
          %v408 = vld [vmem:[%s4 + $0xa0] sm:$0xff]
          %v409 = vld [vmem:[%s4 + $0xa8] sm:$0xff]
          %v410 = vld [vmem:[%s4 + $0xb0] sm:$0xff]
          %v411 = vld [vmem:[%s4 + $0xb8] sm:$0xff]
          %v412 = vld [vmem:[%s4 + $0xc0] sm:$0xff]
          %v413 = vld [vmem:[%s4 + $0xc8] sm:$0xff]
          %v414 = vld [vmem:[%s4 + $0xd0] sm:$0xff]
          %v415 = vld [vmem:[%s4 + $0xd8] sm:$0xff]
          %v416 = vld [vmem:[%s4 + $0xe0] sm:$0xff]
          %v417 = vld [vmem:[%s4 + $0xe8] sm:$0xff]
          %v418 = vld [vmem:[%s4 + $0xf0] sm:$0xff]
          %v419 = vld [vmem:[%s4 + $0xf8] sm:$0xff]
          %v420 = vld [vmem:[%s5] sm:$0xff]
          %v422 = vlaneseq
          %v423 = vshrl.u32 %v422, 7
          %v424 = vsub.s32 0, %v423
          %v425 = vrot.slane %v420, %v424
          %v426 = vlaneseq
          %v427 = vshrl.u32 %v426, 7
          %v428 = vsub.s32 1, %v427
          %v429 = vrot.slane %v420, %v428
          %v430 = vlaneseq
          %v431 = vshrl.u32 %v430, 7
          %v432 = vsub.s32 2, %v431
          %v433 = vrot.slane %v420, %v432
          %v434 = vlaneseq
          %v435 = vshrl.u32 %v434, 7
          %v436 = vsub.s32 3, %v435
          %v437 = vrot.slane %v420, %v436
          %v438 = vlaneseq
          %v439 = vshrl.u32 %v438, 7
          %v440 = vsub.s32 4, %v439
          %v441 = vrot.slane %v420, %v440
          %v442 = vlaneseq
          %v443 = vshrl.u32 %v442, 7
          %v444 = vsub.s32 5, %v443
          %v445 = vrot.slane %v420, %v444
          %v446 = vlaneseq
          %v447 = vshrl.u32 %v446, 7
          %v448 = vsub.s32 6, %v447
          %v449 = vrot.slane %v420, %v448
          %v450 = vlaneseq
          %v451 = vshrl.u32 %v450, 7
          %v452 = vsub.s32 7, %v451
          %v453 = vrot.slane %v420, %v452
          %vm462 = vcmask 261120
          %v464 = vsel %vm462, %v387, 0
          %466 = vmatprep.subr.mxu0 %v389
          %467 = vmatpush1.msra.mxu0 %v388
          %468 = vmatprep.subr.mxu0 %v397
          %469 = vmatpush1.msra.mxu0 %v396
          %470 = vmatprep.subr.mxu0 %v405
          %471 = vmatpush1.msra.mxu0 %v404
          %472 = vmatprep.subr.mxu0 %v413
          %473 = vmatpush1.msra.mxu0 %v412
          %474 = vmatprep.subr.mxu0 0.0
          %475 = vmatpush1.msra.mxu0 0.0
          %476 = vmatprep.subr.mxu0 0.0
          %477 = vmatpush1.msra.mxu0 0.0
          %478 = vmatprep.subr.mxu0 0.0
          %479 = vmatpush1.msra.mxu0 0.0
          %480 = vmatprep.subr.mxu0 0.0
          %481 = vmatpush1.msra.mxu0 0.0
          %482 = vmatprep.subr.mxu0 0.0
          %483 = vmatpush1.msra.mxu0 0.0
          %484 = vmatprep.subr.mxu0 0.0
          %485 = vmatpush1.msra.mxu0 0.0
          %486 = vmatprep.subr.mxu0 0.0
          %487 = vmatpush1.msra.mxu0 0.0
          %488 = vmatprep.subr.mxu0 0.0
          %489 = vmatpush1.msra.mxu0 0.0
          %490 = vmatprep.subr.mxu0 0.0
          %491 = vmatpush1.msra.mxu0 0.0
          %492 = vmatprep.subr.mxu0 0.0
          %493 = vmatpush1.msra.mxu0 0.0
          %494 = vmatprep.subr.mxu0 0.0
          %495 = vmatpush1.msra.mxu0 0.0
          %496 = vmatprep.subr.mxu0 0.0
          %497 = vmatpush1.msra.mxu0 0.0
          %498 = vmatprep.subr.mxu0 0.0
          %499 = vmatpush1.msra.mxu0 0.0
          %500 = vmatprep.subr.mxu0 0.0
          %501 = vmatpush1.msra.mxu0 0.0
          %502 = vmatprep.subr.mxu0 0.0
          %503 = vmatpush1.msra.mxu0 0.0
          %504 = vmatprep.subr.mxu0 0.0
          %505 = vmatpush1.msra.mxu0 0.0
          %506 = vmatprep.subr.mxu0 0.0
          %507 = vmatpush1.msra.mxu0 0.0
          %508 = vmatprep.subr.mxu0 0.0
          %509 = vmatpush1.msra.mxu0 0.0
          %510 = vmatprep.subr.mxu0 0.0
          %511 = vmatpush1.msra.mxu0 0.0
          %512 = vmatprep.subr.mxu0 0.0
          %513 = vmatpush1.msra.mxu0 0.0
          %514 = vmatprep.subr.mxu0 0.0
          %515 = vmatpush1.msra.mxu0 0.0
          %516 = vmatprep.subr.mxu0 0.0
          %517 = vmatpush1.msra.mxu0 0.0
          %518 = vmatprep.subr.mxu0 0.0
          %519 = vmatpush1.msra.mxu0 0.0
          %520 = vmatprep.subr.mxu0 0.0
          %521 = vmatpush1.msra.mxu0 0.0
          %522 = vmatprep.subr.mxu0 0.0
          %523 = vmatpush1.msra.mxu0 0.0
          %524 = vmatprep.subr.mxu0 0.0
          %525 = vmatpush1.msra.mxu0 0.0
          %526 = vmatprep.subr.mxu0 0.0
          %527 = vmatpush1.msra.mxu0 0.0
          %528 = vmatprep.subr.mxu0 0.0
          %529 = vmatpush1.msra.mxu0 0.0
          %530 = vmatprep.mubr.f32.mxu0 0.0
          %531 = vmatmul.mubr.f32.gmra.mrb[0].mxu0 %v464
          %v532 = vpop.f32.mrb[0].mxu0
          %v533 = vadd.f32 %v425, %v532
          %v534 = vpop.f32.mrb[0].mxu0
          %v535 = vadd.f32 %v429, %v534
          %536 = vdwg.mxu0
          %537 = vmatprep.subr.mxu0 %v391
          %538 = vmatpush1.msra.mxu0 %v390
          %539 = vmatprep.subr.mxu0 %v399
          %540 = vmatpush1.msra.mxu0 %v398
          %541 = vmatprep.subr.mxu0 %v407
          %542 = vmatpush1.msra.mxu0 %v406
          %543 = vmatprep.subr.mxu0 %v415
          %544 = vmatpush1.msra.mxu0 %v414
          %545 = vmatprep.subr.mxu0 0.0
          %546 = vmatpush1.msra.mxu0 0.0
          %547 = vmatprep.subr.mxu0 0.0
          %548 = vmatpush1.msra.mxu0 0.0
          %549 = vmatprep.subr.mxu0 0.0
          %550 = vmatpush1.msra.mxu0 0.0
          %551 = vmatprep.subr.mxu0 0.0
          %552 = vmatpush1.msra.mxu0 0.0
          %553 = vmatprep.subr.mxu0 0.0
          %554 = vmatpush1.msra.mxu0 0.0
          %555 = vmatprep.subr.mxu0 0.0
          %556 = vmatpush1.msra.mxu0 0.0
          %557 = vmatprep.subr.mxu0 0.0
          %558 = vmatpush1.msra.mxu0 0.0
          %559 = vmatprep.subr.mxu0 0.0
          %560 = vmatpush1.msra.mxu0 0.0
          %561 = vmatprep.subr.mxu0 0.0
          %562 = vmatpush1.msra.mxu0 0.0
          %563 = vmatprep.subr.mxu0 0.0
          %564 = vmatpush1.msra.mxu0 0.0
          %565 = vmatprep.subr.mxu0 0.0
          %566 = vmatpush1.msra.mxu0 0.0
          %567 = vmatprep.subr.mxu0 0.0
          %568 = vmatpush1.msra.mxu0 0.0
          %569 = vmatprep.subr.mxu0 0.0
          %570 = vmatpush1.msra.mxu0 0.0
          %571 = vmatprep.subr.mxu0 0.0
          %572 = vmatpush1.msra.mxu0 0.0
          %573 = vmatprep.subr.mxu0 0.0
          %574 = vmatpush1.msra.mxu0 0.0
          %575 = vmatprep.subr.mxu0 0.0
          %576 = vmatpush1.msra.mxu0 0.0
          %577 = vmatprep.subr.mxu0 0.0
          %578 = vmatpush1.msra.mxu0 0.0
          %579 = vmatprep.subr.mxu0 0.0
          %580 = vmatpush1.msra.mxu0 0.0
          %581 = vmatprep.subr.mxu0 0.0
          %582 = vmatpush1.msra.mxu0 0.0
          %583 = vmatprep.subr.mxu0 0.0
          %584 = vmatpush1.msra.mxu0 0.0
          %585 = vmatprep.subr.mxu0 0.0
          %586 = vmatpush1.msra.mxu0 0.0
          %587 = vmatprep.subr.mxu0 0.0
          %588 = vmatpush1.msra.mxu0 0.0
          %589 = vmatprep.subr.mxu0 0.0
          %590 = vmatpush1.msra.mxu0 0.0
          %591 = vmatprep.subr.mxu0 0.0
          %592 = vmatpush1.msra.mxu0 0.0
          %593 = vmatprep.subr.mxu0 0.0
          %594 = vmatpush1.msra.mxu0 0.0
          %595 = vmatprep.subr.mxu0 0.0
          %596 = vmatpush1.msra.mxu0 0.0
          %597 = vmatprep.subr.mxu0 0.0
          %598 = vmatpush1.msra.mxu0 0.0
          %599 = vmatprep.subr.mxu0 0.0
          %600 = vmatpush1.msra.mxu0 0.0
          %601 = vmatprep.mubr.f32.mxu0 0.0
          %602 = vmatmul.mubr.f32.gmra.mrb[0].mxu0 %v464
          %v603 = vpop.f32.mrb[0].mxu0
          %v604 = vadd.f32 %v433, %v603
          %v605 = vpop.f32.mrb[0].mxu0
          %v606 = vadd.f32 %v437, %v605
          %607 = vdwg.mxu0
          %608 = vmatprep.subr.mxu0 %v393
          %609 = vmatpush1.msra.mxu0 %v392
          %610 = vmatprep.subr.mxu0 %v401
          %611 = vmatpush1.msra.mxu0 %v400
          %612 = vmatprep.subr.mxu0 %v409
          %613 = vmatpush1.msra.mxu0 %v408
          %614 = vmatprep.subr.mxu0 %v417
          %615 = vmatpush1.msra.mxu0 %v416
          %616 = vmatprep.subr.mxu0 0.0
          %617 = vmatpush1.msra.mxu0 0.0
          %618 = vmatprep.subr.mxu0 0.0
          %619 = vmatpush1.msra.mxu0 0.0
          %620 = vmatprep.subr.mxu0 0.0
          %621 = vmatpush1.msra.mxu0 0.0
          %622 = vmatprep.subr.mxu0 0.0
          %623 = vmatpush1.msra.mxu0 0.0
          %624 = vmatprep.subr.mxu0 0.0
          %625 = vmatpush1.msra.mxu0 0.0
          %626 = vmatprep.subr.mxu0 0.0
          %627 = vmatpush1.msra.mxu0 0.0
          %628 = vmatprep.subr.mxu0 0.0
          %629 = vmatpush1.msra.mxu0 0.0
          %630 = vmatprep.subr.mxu0 0.0
          %631 = vmatpush1.msra.mxu0 0.0
          %632 = vmatprep.subr.mxu0 0.0
          %633 = vmatpush1.msra.mxu0 0.0
          %634 = vmatprep.subr.mxu0 0.0
          %635 = vmatpush1.msra.mxu0 0.0
          %636 = vmatprep.subr.mxu0 0.0
          %637 = vmatpush1.msra.mxu0 0.0
          %638 = vmatprep.subr.mxu0 0.0
          %639 = vmatpush1.msra.mxu0 0.0
          %640 = vmatprep.subr.mxu0 0.0
          %641 = vmatpush1.msra.mxu0 0.0
          %642 = vmatprep.subr.mxu0 0.0
          %643 = vmatpush1.msra.mxu0 0.0
          %644 = vmatprep.subr.mxu0 0.0
          %645 = vmatpush1.msra.mxu0 0.0
          %646 = vmatprep.subr.mxu0 0.0
          %647 = vmatpush1.msra.mxu0 0.0
          %648 = vmatprep.subr.mxu0 0.0
          %649 = vmatpush1.msra.mxu0 0.0
          %650 = vmatprep.subr.mxu0 0.0
          %651 = vmatpush1.msra.mxu0 0.0
          %652 = vmatprep.subr.mxu0 0.0
          %653 = vmatpush1.msra.mxu0 0.0
          %654 = vmatprep.subr.mxu0 0.0
          %655 = vmatpush1.msra.mxu0 0.0
          %656 = vmatprep.subr.mxu0 0.0
          %657 = vmatpush1.msra.mxu0 0.0
          %658 = vmatprep.subr.mxu0 0.0
          %659 = vmatpush1.msra.mxu0 0.0
          %660 = vmatprep.subr.mxu0 0.0
          %661 = vmatpush1.msra.mxu0 0.0
          %662 = vmatprep.subr.mxu0 0.0
          %663 = vmatpush1.msra.mxu0 0.0
          %664 = vmatprep.subr.mxu0 0.0
          %665 = vmatpush1.msra.mxu0 0.0
          %666 = vmatprep.subr.mxu0 0.0
          %667 = vmatpush1.msra.mxu0 0.0
          %668 = vmatprep.subr.mxu0 0.0
          %669 = vmatpush1.msra.mxu0 0.0
          %670 = vmatprep.subr.mxu0 0.0
          %671 = vmatpush1.msra.mxu0 0.0
          %672 = vmatprep.mubr.f32.mxu0 0.0
          %673 = vmatmul.mubr.f32.gmra.mrb[0].mxu0 %v464
          %v674 = vpop.f32.mrb[0].mxu0
          %v675 = vadd.f32 %v441, %v674
          %v676 = vpop.f32.mrb[0].mxu0
          %v677 = vadd.f32 %v445, %v676
          %678 = vdwg.mxu0
          %679 = vmatprep.subr.mxu0 %v395
          %680 = vmatpush1.msra.mxu0 %v394
          %681 = vmatprep.subr.mxu0 %v403
          %682 = vmatpush1.msra.mxu0 %v402
          %683 = vmatprep.subr.mxu0 %v411
          %684 = vmatpush1.msra.mxu0 %v410
          %685 = vmatprep.subr.mxu0 %v419
          %686 = vmatpush1.msra.mxu0 %v418
          %687 = vmatprep.subr.mxu0 0.0
          %688 = vmatpush1.msra.mxu0 0.0
          %689 = vmatprep.subr.mxu0 0.0
          %690 = vmatpush1.msra.mxu0 0.0
          %691 = vmatprep.subr.mxu0 0.0
          %692 = vmatpush1.msra.mxu0 0.0
          %693 = vmatprep.subr.mxu0 0.0
          %694 = vmatpush1.msra.mxu0 0.0
          %695 = vmatprep.subr.mxu0 0.0
          %696 = vmatpush1.msra.mxu0 0.0
          %697 = vmatprep.subr.mxu0 0.0
          %698 = vmatpush1.msra.mxu0 0.0
          %699 = vmatprep.subr.mxu0 0.0
          %700 = vmatpush1.msra.mxu0 0.0
          %701 = vmatprep.subr.mxu0 0.0
          %702 = vmatpush1.msra.mxu0 0.0
          %703 = vmatprep.subr.mxu0 0.0
          %704 = vmatpush1.msra.mxu0 0.0
          %705 = vmatprep.subr.mxu0 0.0
          %706 = vmatpush1.msra.mxu0 0.0
          %707 = vmatprep.subr.mxu0 0.0
          %708 = vmatpush1.msra.mxu0 0.0
          %709 = vmatprep.subr.mxu0 0.0
          %710 = vmatpush1.msra.mxu0 0.0
          %711 = vmatprep.subr.mxu0 0.0
          %712 = vmatpush1.msra.mxu0 0.0
          %713 = vmatprep.subr.mxu0 0.0
          %714 = vmatpush1.msra.mxu0 0.0
          %715 = vmatprep.subr.mxu0 0.0
          %716 = vmatpush1.msra.mxu0 0.0
          %717 = vmatprep.subr.mxu0 0.0
          %718 = vmatpush1.msra.mxu0 0.0
          %719 = vmatprep.subr.mxu0 0.0
          %720 = vmatpush1.msra.mxu0 0.0
          %721 = vmatprep.subr.mxu0 0.0
          %722 = vmatpush1.msra.mxu0 0.0
          %723 = vmatprep.subr.mxu0 0.0
          %724 = vmatpush1.msra.mxu0 0.0
          %725 = vmatprep.subr.mxu0 0.0
          %726 = vmatpush1.msra.mxu0 0.0
          %727 = vmatprep.subr.mxu0 0.0
          %728 = vmatpush1.msra.mxu0 0.0
          %729 = vmatprep.subr.mxu0 0.0
          %730 = vmatpush1.msra.mxu0 0.0
          %731 = vmatprep.subr.mxu0 0.0
          %732 = vmatpush1.msra.mxu0 0.0
          %733 = vmatprep.subr.mxu0 0.0
          %734 = vmatpush1.msra.mxu0 0.0
          %735 = vmatprep.subr.mxu0 0.0
          %736 = vmatpush1.msra.mxu0 0.0
          %737 = vmatprep.subr.mxu0 0.0
          %738 = vmatpush1.msra.mxu0 0.0
          %739 = vmatprep.subr.mxu0 0.0
          %740 = vmatpush1.msra.mxu0 0.0
          %741 = vmatprep.subr.mxu0 0.0
          %742 = vmatpush1.msra.mxu0 0.0
          %743 = vmatprep.mubr.f32.mxu0 0.0
          %744 = vmatmul.mubr.f32.gmra.mrb[0].mxu0 %v464
          %v745 = vpop.f32.mrb[0].mxu0
          %v746 = vadd.f32 %v449, %v745
          %v747 = vpop.f32.mrb[0].mxu0
          %v748 = vadd.f32 %v453, %v747
          %749 = vdwg.mxu0
          %750 = vst [vmem:[#allocation2] sm:$0xff] %v533
          %751 = vst [vmem:[#allocation2 + $0x8] sm:$0xff] %v535
          %752 = vst [vmem:[#allocation2 + $0x10] sm:$0xff] %v604
          %753 = vst [vmem:[#allocation2 + $0x18] sm:$0xff] %v606
          %754 = vst [vmem:[#allocation2 + $0x20] sm:$0xff] %v675
          %755 = vst [vmem:[#allocation2 + $0x28] sm:$0xff] %v677
          %756 = vst [vmem:[#allocation2 + $0x30] sm:$0xff] %v746
          %757 = vst [vmem:[#allocation2 + $0x38] sm:$0xff] %v748
        $region56: #{tpu_custom_call.1} parent=51 // pred_fallthru
          _
        %v758 = vld [vmem:[%s378] sm:$0xff]
        %v759 = vld [vmem:[%s2] sm:$0xff]
        %v760 = vld [vmem:[%s2 + $0x8] sm:$0xff]
        %v761 = vld [vmem:[%s2 + $0x10] sm:$0xff]
        %v762 = vld [vmem:[%s2 + $0x18] sm:$0xff]
        %v763 = vld [vmem:[%s2 + $0x20] sm:$0xff]
        %v764 = vld [vmem:[%s2 + $0x28] sm:$0xff]
        %v765 = vld [vmem:[%s2 + $0x30] sm:$0xff]
        %v766 = vld [vmem:[%s2 + $0x38] sm:$0xff]
        %v767 = vld [vmem:[%s2 + $0x40] sm:$0xff]
        %v768 = vld [vmem:[%s2 + $0x48] sm:$0xff]
        %v769 = vld [vmem:[%s2 + $0x50] sm:$0xff]
        %v770 = vld [vmem:[%s2 + $0x58] sm:$0xff]
        %v771 = vld [vmem:[%s2 + $0x60] sm:$0xff]
        %v772 = vld [vmem:[%s2 + $0x68] sm:$0xff]
        %v773 = vld [vmem:[%s2 + $0x70] sm:$0xff]
        %v774 = vld [vmem:[%s2 + $0x78] sm:$0xff]
        %v775 = vld [vmem:[%s3] sm:$0xf]
        %v777 = vlaneseq
        %v778 = vshrl.u32 %v777, 7
        %v779 = vsub.s32 0, %v778
        %v780 = vrot.slane %v775, %v779
        %v781 = vlaneseq
        %v782 = vshrl.u32 %v781, 7
        %v783 = vsub.s32 1, %v782
        %v784 = vrot.slane %v775, %v783
        %v785 = vlaneseq
        %v786 = vshrl.u32 %v785, 7
        %v787 = vsub.s32 2, %v786
        %v788 = vrot.slane %v775, %v787
        %v789 = vlaneseq
        %v790 = vshrl.u32 %v789, 7
        %v791 = vsub.s32 3, %v790
        %v792 = vrot.slane %v775, %v791
        %vm797 = vcmask 261120
        %v799 = vsel %vm797, %v758, 0
        %801 = vmatprep.subr.mxu0 %v760
        %802 = vmatpush1.msra.mxu0 %v759
        %803 = vmatprep.subr.mxu0 %v764
        %804 = vmatpush1.msra.mxu0 %v763
        %805 = vmatprep.subr.mxu0 %v768
        %806 = vmatpush1.msra.mxu0 %v767
        %807 = vmatprep.subr.mxu0 %v772
        %808 = vmatpush1.msra.mxu0 %v771
        %809 = vmatprep.subr.mxu0 0.0
        %810 = vmatpush1.msra.mxu0 0.0
        %811 = vmatprep.subr.mxu0 0.0
        %812 = vmatpush1.msra.mxu0 0.0
        %813 = vmatprep.subr.mxu0 0.0
        %814 = vmatpush1.msra.mxu0 0.0
        %815 = vmatprep.subr.mxu0 0.0
        %816 = vmatpush1.msra.mxu0 0.0
        %817 = vmatprep.subr.mxu0 0.0
        %818 = vmatpush1.msra.mxu0 0.0
        %819 = vmatprep.subr.mxu0 0.0
        %820 = vmatpush1.msra.mxu0 0.0
        %821 = vmatprep.subr.mxu0 0.0
        %822 = vmatpush1.msra.mxu0 0.0
        %823 = vmatprep.subr.mxu0 0.0
        %824 = vmatpush1.msra.mxu0 0.0
        %825 = vmatprep.subr.mxu0 0.0
        %826 = vmatpush1.msra.mxu0 0.0
        %827 = vmatprep.subr.mxu0 0.0
        %828 = vmatpush1.msra.mxu0 0.0
        %829 = vmatprep.subr.mxu0 0.0
        %830 = vmatpush1.msra.mxu0 0.0
        %831 = vmatprep.subr.mxu0 0.0
        %832 = vmatpush1.msra.mxu0 0.0
        %833 = vmatprep.subr.mxu0 0.0
        %834 = vmatpush1.msra.mxu0 0.0
        %835 = vmatprep.subr.mxu0 0.0
        %836 = vmatpush1.msra.mxu0 0.0
        %837 = vmatprep.subr.mxu0 0.0
        %838 = vmatpush1.msra.mxu0 0.0
        %839 = vmatprep.subr.mxu0 0.0
        %840 = vmatpush1.msra.mxu0 0.0
        %841 = vmatprep.subr.mxu0 0.0
        %842 = vmatpush1.msra.mxu0 0.0
        %843 = vmatprep.subr.mxu0 0.0
        %844 = vmatpush1.msra.mxu0 0.0
        %845 = vmatprep.subr.mxu0 0.0
        %846 = vmatpush1.msra.mxu0 0.0
        %847 = vmatprep.subr.mxu0 0.0
        %848 = vmatpush1.msra.mxu0 0.0
        %849 = vmatprep.subr.mxu0 0.0
        %850 = vmatpush1.msra.mxu0 0.0
        %851 = vmatprep.subr.mxu0 0.0
        %852 = vmatpush1.msra.mxu0 0.0
        %853 = vmatprep.subr.mxu0 0.0
        %854 = vmatpush1.msra.mxu0 0.0
        %855 = vmatprep.subr.mxu0 0.0
        %856 = vmatpush1.msra.mxu0 0.0
        %857 = vmatprep.subr.mxu0 0.0
        %858 = vmatpush1.msra.mxu0 0.0
        %859 = vmatprep.subr.mxu0 0.0
        %860 = vmatpush1.msra.mxu0 0.0
        %861 = vmatprep.subr.mxu0 0.0
        %862 = vmatpush1.msra.mxu0 0.0
        %863 = vmatprep.subr.mxu0 0.0
        %864 = vmatpush1.msra.mxu0 0.0
        %865 = vmatprep.mubr.f32.mxu0 0.0
        %866 = vmatmul.mubr.f32.gmra.mrb[0].mxu0 %v799
        %v867 = vpop.f32.mrb[0].mxu0
        %v868 = vadd.f32 %v780, %v867
        %v869 = vpop.f32.mrb[0].mxu0
        %v870 = vadd.f32 %v784, %v869
        %871 = vdwg.mxu0
        %872 = vmatprep.subr.mxu0 %v762
        %873 = vmatpush1.msra.mxu0 %v761
        %874 = vmatprep.subr.mxu0 %v766
        %875 = vmatpush1.msra.mxu0 %v765
        %876 = vmatprep.subr.mxu0 %v770
        %877 = vmatpush1.msra.mxu0 %v769
        %878 = vmatprep.subr.mxu0 %v774
        %879 = vmatpush1.msra.mxu0 %v773
        %880 = vmatprep.subr.mxu0 0.0
        %881 = vmatpush1.msra.mxu0 0.0
        %882 = vmatprep.subr.mxu0 0.0
        %883 = vmatpush1.msra.mxu0 0.0
        %884 = vmatprep.subr.mxu0 0.0
        %885 = vmatpush1.msra.mxu0 0.0
        %886 = vmatprep.subr.mxu0 0.0
        %887 = vmatpush1.msra.mxu0 0.0
        %888 = vmatprep.subr.mxu0 0.0
        %889 = vmatpush1.msra.mxu0 0.0
        %890 = vmatprep.subr.mxu0 0.0
        %891 = vmatpush1.msra.mxu0 0.0
        %892 = vmatprep.subr.mxu0 0.0
        %893 = vmatpush1.msra.mxu0 0.0
        %894 = vmatprep.subr.mxu0 0.0
        %895 = vmatpush1.msra.mxu0 0.0
        %896 = vmatprep.subr.mxu0 0.0
        %897 = vmatpush1.msra.mxu0 0.0
        %898 = vmatprep.subr.mxu0 0.0
        %899 = vmatpush1.msra.mxu0 0.0
        %900 = vmatprep.subr.mxu0 0.0
        %901 = vmatpush1.msra.mxu0 0.0
        %902 = vmatprep.subr.mxu0 0.0
        %903 = vmatpush1.msra.mxu0 0.0
        %904 = vmatprep.subr.mxu0 0.0
        %905 = vmatpush1.msra.mxu0 0.0
        %906 = vmatprep.subr.mxu0 0.0
        %907 = vmatpush1.msra.mxu0 0.0
        %908 = vmatprep.subr.mxu0 0.0
        %909 = vmatpush1.msra.mxu0 0.0
        %910 = vmatprep.subr.mxu0 0.0
        %911 = vmatpush1.msra.mxu0 0.0
        %912 = vmatprep.subr.mxu0 0.0
        %913 = vmatpush1.msra.mxu0 0.0
        %914 = vmatprep.subr.mxu0 0.0
        %915 = vmatpush1.msra.mxu0 0.0
        %916 = vmatprep.subr.mxu0 0.0
        %917 = vmatpush1.msra.mxu0 0.0
        %918 = vmatprep.subr.mxu0 0.0
        %919 = vmatpush1.msra.mxu0 0.0
        %920 = vmatprep.subr.mxu0 0.0
        %921 = vmatpush1.msra.mxu0 0.0
        %922 = vmatprep.subr.mxu0 0.0
        %923 = vmatpush1.msra.mxu0 0.0
        %924 = vmatprep.subr.mxu0 0.0
        %925 = vmatpush1.msra.mxu0 0.0
        %926 = vmatprep.subr.mxu0 0.0
        %927 = vmatpush1.msra.mxu0 0.0
        %928 = vmatprep.subr.mxu0 0.0
        %929 = vmatpush1.msra.mxu0 0.0
        %930 = vmatprep.subr.mxu0 0.0
        %931 = vmatpush1.msra.mxu0 0.0
        %932 = vmatprep.subr.mxu0 0.0
        %933 = vmatpush1.msra.mxu0 0.0
        %934 = vmatprep.subr.mxu0 0.0
        %935 = vmatpush1.msra.mxu0 0.0
        %936 = vmatprep.mubr.f32.mxu0 0.0
        %937 = vmatmul.mubr.f32.gmra.mrb[0].mxu0 %v799
        %v938 = vpop.f32.mrb[0].mxu0
        %v939 = vadd.f32 %v788, %v938
        %v940 = vpop.f32.mrb[0].mxu0
        %v941 = vadd.f32 %v792, %v940
        %942 = vdwg.mxu0
        %v943 = vld [vmem:[#allocation2] sm:$0xff]
        %v944 = vld [vmem:[#allocation2 + $0x20] sm:$0xff]
        %945 = vmatprep.subr.mxu0 0.0
        %946 = vmatpush1.xpose.msra.mxu0 %v943
        %947 = vmatprep.subr.mxu0 0.0
        %948 = vmatpush1.xpose.msra.mxu0 0.0
        %949 = vmatprep.subr.mxu0 0.0
        %950 = vmatpush1.xpose.msra.mxu0 0.0
        %951 = vmatprep.subr.mxu0 0.0
        %952 = vmatpush1.xpose.msra.mxu0 0.0
        %953 = vmatprep.subr.mxu0 0.0
        %954 = vmatpush1.xpose.msra.mxu0 0.0
        %955 = vmatprep.subr.mxu0 0.0
        %956 = vmatpush1.xpose.msra.mxu0 0.0
        %957 = vmatprep.subr.mxu0 0.0
        %958 = vmatpush1.xpose.msra.mxu0 0.0
        %959 = vmatprep.subr.mxu0 0.0
        %960 = vmatpush1.xpose.msra.mxu0 0.0
        %961 = vmatprep.subr.mxu0 0.0
        %962 = vmatpush1.xpose.msra.mxu0 0.0
        %963 = vmatprep.subr.mxu0 0.0
        %964 = vmatpush1.xpose.msra.mxu0 0.0
        %965 = vmatprep.subr.mxu0 0.0
        %966 = vmatpush1.xpose.msra.mxu0 0.0
        %967 = vmatprep.subr.mxu0 0.0
        %968 = vmatpush1.xpose.msra.mxu0 0.0
        %969 = vmatprep.subr.mxu0 0.0
        %970 = vmatpush1.xpose.msra.mxu0 0.0
        %971 = vmatprep.subr.mxu0 0.0
        %972 = vmatpush1.xpose.msra.mxu0 0.0
        %973 = vmatprep.subr.mxu0 0.0
        %974 = vmatpush1.xpose.msra.mxu0 0.0
        %975 = vmatprep.subr.mxu0 0.0
        %976 = vmatpush1.xpose.msra.mxu0 0.0
        %977 = vmatprep.subr.mxu0 0.0
        %978 = vmatpush1.xpose.msra.mxu0 0.0
        %979 = vmatprep.subr.mxu0 0.0
        %980 = vmatpush1.xpose.msra.mxu0 0.0
        %981 = vmatprep.subr.mxu0 0.0
        %982 = vmatpush1.xpose.msra.mxu0 0.0
        %983 = vmatprep.subr.mxu0 0.0
        %984 = vmatpush1.xpose.msra.mxu0 0.0
        %985 = vmatprep.subr.mxu0 0.0
        %986 = vmatpush1.xpose.msra.mxu0 0.0
        %987 = vmatprep.subr.mxu0 0.0
        %988 = vmatpush1.xpose.msra.mxu0 0.0
        %989 = vmatprep.subr.mxu0 0.0
        %990 = vmatpush1.xpose.msra.mxu0 0.0
        %991 = vmatprep.subr.mxu0 0.0
        %992 = vmatpush1.xpose.msra.mxu0 0.0
        %993 = vmatprep.subr.mxu0 0.0
        %994 = vmatpush1.xpose.msra.mxu0 0.0
        %995 = vmatprep.subr.mxu0 0.0
        %996 = vmatpush1.xpose.msra.mxu0 0.0
        %997 = vmatprep.subr.mxu0 0.0
        %998 = vmatpush1.xpose.msra.mxu0 0.0
        %999 = vmatprep.subr.mxu0 0.0
        %1000 = vmatpush1.xpose.msra.mxu0 0.0
        %1001 = vmatprep.subr.mxu0 0.0
        %1002 = vmatpush1.xpose.msra.mxu0 0.0
        %1003 = vmatprep.subr.mxu0 0.0
        %1004 = vmatpush1.xpose.msra.mxu0 0.0
        %1005 = vmatprep.subr.mxu0 0.0
        %1006 = vmatpush1.xpose.msra.mxu0 0.0
        %1007 = vmatprep.subr.mxu0 0.0
        %1008 = vmatpush1.xpose.msra.mxu0 0.0
        %1009 = vmatprep.mubr.f32.mxu0 0.0
        %1010 = vmatmul.mubr.f32.gmra.mrb[0].mxu0 %v868
        %v1011 = vpop.f32.mrb[0].mxu0
        %v1012 = vadd.f32 0.0, %v1011
        %v1013 = vpop.f32.mrb[0].mxu0
        %1014 = vdwg.mxu0
        %vm1015 = vcmask 64512
        %v1016 = vsel %vm1015, %v1012, -inf
        %1017 = vmax.xlane.f32.xlu0 %v1016
        %v1018 = vpop.xlane.xlu0 %1017
        %v1019 = vsub.f32 %v1012, %v1018
        %v1020 = vmul.f32 %v1019, 1.442695
        %v1021 = vpow.pop %v1020
        %v1022 = vsel %vm1015, %v1021, 0.0
        %1023 = vadd.xlane.f32.xlu0 %v1022
        %v1024 = vpop.xlane.xlu0 %1023
        %v1025 = vrcp.pop %v1024
        %v1026 = vmul.f32 %v1021, %v1025
        %v1028 = vsel %vm1015, %v1026, 0
        %1030 = vmatprep.subr.mxu0 0.0
        %1031 = vmatpush1.msra.mxu0 %v944
        %1032 = vmatprep.subr.mxu0 0.0
        %1033 = vmatpush1.msra.mxu0 0.0
        %1034 = vmatprep.subr.mxu0 0.0
        %1035 = vmatpush1.msra.mxu0 0.0
        %1036 = vmatprep.subr.mxu0 0.0
        %1037 = vmatpush1.msra.mxu0 0.0
        %1038 = vmatprep.subr.mxu0 0.0
        %1039 = vmatpush1.msra.mxu0 0.0
        %1040 = vmatprep.subr.mxu0 0.0
        %1041 = vmatpush1.msra.mxu0 0.0
        %1042 = vmatprep.subr.mxu0 0.0
        %1043 = vmatpush1.msra.mxu0 0.0
        %1044 = vmatprep.subr.mxu0 0.0
        %1045 = vmatpush1.msra.mxu0 0.0
        %1046 = vmatprep.subr.mxu0 0.0
        %1047 = vmatpush1.msra.mxu0 0.0
        %1048 = vmatprep.subr.mxu0 0.0
        %1049 = vmatpush1.msra.mxu0 0.0
        %1050 = vmatprep.subr.mxu0 0.0
        %1051 = vmatpush1.msra.mxu0 0.0
        %1052 = vmatprep.subr.mxu0 0.0
        %1053 = vmatpush1.msra.mxu0 0.0
        %1054 = vmatprep.subr.mxu0 0.0
        %1055 = vmatpush1.msra.mxu0 0.0
        %1056 = vmatprep.subr.mxu0 0.0
        %1057 = vmatpush1.msra.mxu0 0.0
        %1058 = vmatprep.subr.mxu0 0.0
        %1059 = vmatpush1.msra.mxu0 0.0
        %1060 = vmatprep.subr.mxu0 0.0
        %1061 = vmatpush1.msra.mxu0 0.0
        %1062 = vmatprep.subr.mxu0 0.0
        %1063 = vmatpush1.msra.mxu0 0.0
        %1064 = vmatprep.subr.mxu0 0.0
        %1065 = vmatpush1.msra.mxu0 0.0
        %1066 = vmatprep.subr.mxu0 0.0
        %1067 = vmatpush1.msra.mxu0 0.0
        %1068 = vmatprep.subr.mxu0 0.0
        %1069 = vmatpush1.msra.mxu0 0.0
        %1070 = vmatprep.subr.mxu0 0.0
        %1071 = vmatpush1.msra.mxu0 0.0
        %1072 = vmatprep.subr.mxu0 0.0
        %1073 = vmatpush1.msra.mxu0 0.0
        %1074 = vmatprep.subr.mxu0 0.0
        %1075 = vmatpush1.msra.mxu0 0.0
        %1076 = vmatprep.subr.mxu0 0.0
        %1077 = vmatpush1.msra.mxu0 0.0
        %1078 = vmatprep.subr.mxu0 0.0
        %1079 = vmatpush1.msra.mxu0 0.0
        %1080 = vmatprep.subr.mxu0 0.0
        %1081 = vmatpush1.msra.mxu0 0.0
        %1082 = vmatprep.subr.mxu0 0.0
        %1083 = vmatpush1.msra.mxu0 0.0
        %1084 = vmatprep.subr.mxu0 0.0
        %1085 = vmatpush1.msra.mxu0 0.0
        %1086 = vmatprep.subr.mxu0 0.0
        %1087 = vmatpush1.msra.mxu0 0.0
        %1088 = vmatprep.subr.mxu0 0.0
        %1089 = vmatpush1.msra.mxu0 0.0
        %1090 = vmatprep.subr.mxu0 0.0
        %1091 = vmatpush1.msra.mxu0 0.0
        %1092 = vmatprep.subr.mxu0 0.0
        %1093 = vmatpush1.msra.mxu0 0.0
        %1094 = vmatprep.mubr.f32.mxu0 0.0
        %1095 = vmatmul.mubr.f32.gmra.mrb[0].mxu0 %v1028
        %v1096 = vpop.f32.mrb[0].mxu0
        %v1097 = vadd.f32 0.0, %v1096
        %v1098 = vpop.f32.mrb[0].mxu0
        %1099 = vdwg.mxu0
        %1100 = vst [vmem:[#allocation3] sm:$0xff] %v1097
        %1101 = vst.msk [vmem:[%s371] sm:$0xff] %vm1015, %v1026
        %v1102 = vld [vmem:[#allocation2 + $0x8] sm:$0xff]
        %v1103 = vld [vmem:[#allocation2 + $0x28] sm:$0xff]
        %1104 = vmatprep.subr.mxu0 0.0
        %1105 = vmatpush1.xpose.msra.mxu0 %v1102
        %1106 = vmatprep.subr.mxu0 0.0
        %1107 = vmatpush1.xpose.msra.mxu0 0.0
        %1108 = vmatprep.subr.mxu0 0.0
        %1109 = vmatpush1.xpose.msra.mxu0 0.0
        %1110 = vmatprep.subr.mxu0 0.0
        %1111 = vmatpush1.xpose.msra.mxu0 0.0
        %1112 = vmatprep.subr.mxu0 0.0
        %1113 = vmatpush1.xpose.msra.mxu0 0.0
        %1114 = vmatprep.subr.mxu0 0.0
        %1115 = vmatpush1.xpose.msra.mxu0 0.0
        %1116 = vmatprep.subr.mxu0 0.0
        %1117 = vmatpush1.xpose.msra.mxu0 0.0
        %1118 = vmatprep.subr.mxu0 0.0
        %1119 = vmatpush1.xpose.msra.mxu0 0.0
        %1120 = vmatprep.subr.mxu0 0.0
        %1121 = vmatpush1.xpose.msra.mxu0 0.0
        %1122 = vmatprep.subr.mxu0 0.0
        %1123 = vmatpush1.xpose.msra.mxu0 0.0
        %1124 = vmatprep.subr.mxu0 0.0
        %1125 = vmatpush1.xpose.msra.mxu0 0.0
        %1126 = vmatprep.subr.mxu0 0.0
        %1127 = vmatpush1.xpose.msra.mxu0 0.0
        %1128 = vmatprep.subr.mxu0 0.0
        %1129 = vmatpush1.xpose.msra.mxu0 0.0
        %1130 = vmatprep.subr.mxu0 0.0
        %1131 = vmatpush1.xpose.msra.mxu0 0.0
        %1132 = vmatprep.subr.mxu0 0.0
        %1133 = vmatpush1.xpose.msra.mxu0 0.0
        %1134 = vmatprep.subr.mxu0 0.0
        %1135 = vmatpush1.xpose.msra.mxu0 0.0
        %1136 = vmatprep.subr.mxu0 0.0
        %1137 = vmatpush1.xpose.msra.mxu0 0.0
        %1138 = vmatprep.subr.mxu0 0.0
        %1139 = vmatpush1.xpose.msra.mxu0 0.0
        %1140 = vmatprep.subr.mxu0 0.0
        %1141 = vmatpush1.xpose.msra.mxu0 0.0
        %1142 = vmatprep.subr.mxu0 0.0
        %1143 = vmatpush1.xpose.msra.mxu0 0.0
        %1144 = vmatprep.subr.mxu0 0.0
        %1145 = vmatpush1.xpose.msra.mxu0 0.0
        %1146 = vmatprep.subr.mxu0 0.0
        %1147 = vmatpush1.xpose.msra.mxu0 0.0
        %1148 = vmatprep.subr.mxu0 0.0
        %1149 = vmatpush1.xpose.msra.mxu0 0.0
        %1150 = vmatprep.subr.mxu0 0.0
        %1151 = vmatpush1.xpose.msra.mxu0 0.0
        %1152 = vmatprep.subr.mxu0 0.0
        %1153 = vmatpush1.xpose.msra.mxu0 0.0
        %1154 = vmatprep.subr.mxu0 0.0
        %1155 = vmatpush1.xpose.msra.mxu0 0.0
        %1156 = vmatprep.subr.mxu0 0.0
        %1157 = vmatpush1.xpose.msra.mxu0 0.0
        %1158 = vmatprep.subr.mxu0 0.0
        %1159 = vmatpush1.xpose.msra.mxu0 0.0
        %1160 = vmatprep.subr.mxu0 0.0
        %1161 = vmatpush1.xpose.msra.mxu0 0.0
        %1162 = vmatprep.subr.mxu0 0.0
        %1163 = vmatpush1.xpose.msra.mxu0 0.0
        %1164 = vmatprep.subr.mxu0 0.0
        %1165 = vmatpush1.xpose.msra.mxu0 0.0
        %1166 = vmatprep.subr.mxu0 0.0
        %1167 = vmatpush1.xpose.msra.mxu0 0.0
        %1168 = vmatprep.mubr.f32.mxu0 0.0
        %1169 = vmatmul.mubr.f32.gmra.mrb[0].mxu0 %v870
        %v1170 = vpop.f32.mrb[0].mxu0
        %v1171 = vadd.f32 0.0, %v1170
        %v1172 = vpop.f32.mrb[0].mxu0
        %1173 = vdwg.mxu0
        %v1174 = vsel %vm1015, %v1171, -inf
        %1175 = vmax.xlane.f32.xlu0 %v1174
        %v1176 = vpop.xlane.xlu0 %1175
        %v1177 = vsub.f32 %v1171, %v1176
        %v1178 = vmul.f32 %v1177, 1.442695
        %v1179 = vpow.pop %v1178
        %v1180 = vsel %vm1015, %v1179, 0.0
        %1181 = vadd.xlane.f32.xlu0 %v1180
        %v1182 = vpop.xlane.xlu0 %1181
        %v1183 = vrcp.pop %v1182
        %v1184 = vmul.f32 %v1179, %v1183
        %v1186 = vsel %vm1015, %v1184, 0
        %1188 = vmatprep.subr.mxu0 0.0
        %1189 = vmatpush1.msra.mxu0 %v1103
        %1190 = vmatprep.subr.mxu0 0.0
        %1191 = vmatpush1.msra.mxu0 0.0
        %1192 = vmatprep.subr.mxu0 0.0
        %1193 = vmatpush1.msra.mxu0 0.0
        %1194 = vmatprep.subr.mxu0 0.0
        %1195 = vmatpush1.msra.mxu0 0.0
        %1196 = vmatprep.subr.mxu0 0.0
        %1197 = vmatpush1.msra.mxu0 0.0
        %1198 = vmatprep.subr.mxu0 0.0
        %1199 = vmatpush1.msra.mxu0 0.0
        %1200 = vmatprep.subr.mxu0 0.0
        %1201 = vmatpush1.msra.mxu0 0.0
        %1202 = vmatprep.subr.mxu0 0.0
        %1203 = vmatpush1.msra.mxu0 0.0
        %1204 = vmatprep.subr.mxu0 0.0
        %1205 = vmatpush1.msra.mxu0 0.0
        %1206 = vmatprep.subr.mxu0 0.0
        %1207 = vmatpush1.msra.mxu0 0.0
        %1208 = vmatprep.subr.mxu0 0.0
        %1209 = vmatpush1.msra.mxu0 0.0
        %1210 = vmatprep.subr.mxu0 0.0
        %1211 = vmatpush1.msra.mxu0 0.0
        %1212 = vmatprep.subr.mxu0 0.0
        %1213 = vmatpush1.msra.mxu0 0.0
        %1214 = vmatprep.subr.mxu0 0.0
        %1215 = vmatpush1.msra.mxu0 0.0
        %1216 = vmatprep.subr.mxu0 0.0
        %1217 = vmatpush1.msra.mxu0 0.0
        %1218 = vmatprep.subr.mxu0 0.0
        %1219 = vmatpush1.msra.mxu0 0.0
        %1220 = vmatprep.subr.mxu0 0.0
        %1221 = vmatpush1.msra.mxu0 0.0
        %1222 = vmatprep.subr.mxu0 0.0
        %1223 = vmatpush1.msra.mxu0 0.0
        %1224 = vmatprep.subr.mxu0 0.0
        %1225 = vmatpush1.msra.mxu0 0.0
        %1226 = vmatprep.subr.mxu0 0.0
        %1227 = vmatpush1.msra.mxu0 0.0
        %1228 = vmatprep.subr.mxu0 0.0
        %1229 = vmatpush1.msra.mxu0 0.0
        %1230 = vmatprep.subr.mxu0 0.0
        %1231 = vmatpush1.msra.mxu0 0.0
        %1232 = vmatprep.subr.mxu0 0.0
        %1233 = vmatpush1.msra.mxu0 0.0
        %1234 = vmatprep.subr.mxu0 0.0
        %1235 = vmatpush1.msra.mxu0 0.0
        %1236 = vmatprep.subr.mxu0 0.0
        %1237 = vmatpush1.msra.mxu0 0.0
        %1238 = vmatprep.subr.mxu0 0.0
        %1239 = vmatpush1.msra.mxu0 0.0
        %1240 = vmatprep.subr.mxu0 0.0
        %1241 = vmatpush1.msra.mxu0 0.0
        %1242 = vmatprep.subr.mxu0 0.0
        %1243 = vmatpush1.msra.mxu0 0.0
        %1244 = vmatprep.subr.mxu0 0.0
        %1245 = vmatpush1.msra.mxu0 0.0
        %1246 = vmatprep.subr.mxu0 0.0
        %1247 = vmatpush1.msra.mxu0 0.0
        %1248 = vmatprep.subr.mxu0 0.0
        %1249 = vmatpush1.msra.mxu0 0.0
        %1250 = vmatprep.subr.mxu0 0.0
        %1251 = vmatpush1.msra.mxu0 0.0
        %1252 = vmatprep.mubr.f32.mxu0 0.0
        %1253 = vmatmul.mubr.f32.gmra.mrb[0].mxu0 %v1186
        %v1254 = vpop.f32.mrb[0].mxu0
        %v1255 = vadd.f32 0.0, %v1254
        %v1256 = vpop.f32.mrb[0].mxu0
        %1257 = vdwg.mxu0
        %1258 = vst [vmem:[#allocation3 + $0x8] sm:$0xff] %v1255
        %v1259 = vld [vmem:[%s371] sm:$0xff]
        %v1260 = vadd.f32 %v1259, %v1184
        %1261 = vst.msk [vmem:[%s371] sm:$0xff] %vm1015, %v1260
        %v1262 = vld [vmem:[#allocation2 + $0x10] sm:$0xff]
        %v1263 = vld [vmem:[#allocation2 + $0x30] sm:$0xff]
        %1264 = vmatprep.subr.mxu0 0.0
        %1265 = vmatpush1.xpose.msra.mxu0 %v1262
        %1266 = vmatprep.subr.mxu0 0.0
        %1267 = vmatpush1.xpose.msra.mxu0 0.0
        %1268 = vmatprep.subr.mxu0 0.0
        %1269 = vmatpush1.xpose.msra.mxu0 0.0
        %1270 = vmatprep.subr.mxu0 0.0
        %1271 = vmatpush1.xpose.msra.mxu0 0.0
        %1272 = vmatprep.subr.mxu0 0.0
        %1273 = vmatpush1.xpose.msra.mxu0 0.0
        %1274 = vmatprep.subr.mxu0 0.0
        %1275 = vmatpush1.xpose.msra.mxu0 0.0
        %1276 = vmatprep.subr.mxu0 0.0
        %1277 = vmatpush1.xpose.msra.mxu0 0.0
        %1278 = vmatprep.subr.mxu0 0.0
        %1279 = vmatpush1.xpose.msra.mxu0 0.0
        %1280 = vmatprep.subr.mxu0 0.0
        %1281 = vmatpush1.xpose.msra.mxu0 0.0
        %1282 = vmatprep.subr.mxu0 0.0
        %1283 = vmatpush1.xpose.msra.mxu0 0.0
        %1284 = vmatprep.subr.mxu0 0.0
        %1285 = vmatpush1.xpose.msra.mxu0 0.0
        %1286 = vmatprep.subr.mxu0 0.0
        %1287 = vmatpush1.xpose.msra.mxu0 0.0
        %1288 = vmatprep.subr.mxu0 0.0
        %1289 = vmatpush1.xpose.msra.mxu0 0.0
        %1290 = vmatprep.subr.mxu0 0.0
        %1291 = vmatpush1.xpose.msra.mxu0 0.0
        %1292 = vmatprep.subr.mxu0 0.0
        %1293 = vmatpush1.xpose.msra.mxu0 0.0
        %1294 = vmatprep.subr.mxu0 0.0
        %1295 = vmatpush1.xpose.msra.mxu0 0.0
        %1296 = vmatprep.subr.mxu0 0.0
        %1297 = vmatpush1.xpose.msra.mxu0 0.0
        %1298 = vmatprep.subr.mxu0 0.0
        %1299 = vmatpush1.xpose.msra.mxu0 0.0
        %1300 = vmatprep.subr.mxu0 0.0
        %1301 = vmatpush1.xpose.msra.mxu0 0.0
        %1302 = vmatprep.subr.mxu0 0.0
        %1303 = vmatpush1.xpose.msra.mxu0 0.0
        %1304 = vmatprep.subr.mxu0 0.0
        %1305 = vmatpush1.xpose.msra.mxu0 0.0
        %1306 = vmatprep.subr.mxu0 0.0
        %1307 = vmatpush1.xpose.msra.mxu0 0.0
        %1308 = vmatprep.subr.mxu0 0.0
        %1309 = vmatpush1.xpose.msra.mxu0 0.0
        %1310 = vmatprep.subr.mxu0 0.0
        %1311 = vmatpush1.xpose.msra.mxu0 0.0
        %1312 = vmatprep.subr.mxu0 0.0
        %1313 = vmatpush1.xpose.msra.mxu0 0.0
        %1314 = vmatprep.subr.mxu0 0.0
        %1315 = vmatpush1.xpose.msra.mxu0 0.0
        %1316 = vmatprep.subr.mxu0 0.0
        %1317 = vmatpush1.xpose.msra.mxu0 0.0
        %1318 = vmatprep.subr.mxu0 0.0
        %1319 = vmatpush1.xpose.msra.mxu0 0.0
        %1320 = vmatprep.subr.mxu0 0.0
        %1321 = vmatpush1.xpose.msra.mxu0 0.0
        %1322 = vmatprep.subr.mxu0 0.0
        %1323 = vmatpush1.xpose.msra.mxu0 0.0
        %1324 = vmatprep.subr.mxu0 0.0
        %1325 = vmatpush1.xpose.msra.mxu0 0.0
        %1326 = vmatprep.subr.mxu0 0.0
        %1327 = vmatpush1.xpose.msra.mxu0 0.0
        %1328 = vmatprep.mubr.f32.mxu0 0.0
        %1329 = vmatmul.mubr.f32.gmra.mrb[0].mxu0 %v939
        %v1330 = vpop.f32.mrb[0].mxu0
        %v1331 = vadd.f32 0.0, %v1330
        %v1332 = vpop.f32.mrb[0].mxu0
        %1333 = vdwg.mxu0
        %v1334 = vsel %vm1015, %v1331, -inf
        %1335 = vmax.xlane.f32.xlu0 %v1334
        %v1336 = vpop.xlane.xlu0 %1335
        %v1337 = vsub.f32 %v1331, %v1336
        %v1338 = vmul.f32 %v1337, 1.442695
        %v1339 = vpow.pop %v1338
        %v1340 = vsel %vm1015, %v1339, 0.0
        %1341 = vadd.xlane.f32.xlu0 %v1340
        %v1342 = vpop.xlane.xlu0 %1341
        %v1343 = vrcp.pop %v1342
        %v1344 = vmul.f32 %v1339, %v1343
        %v1346 = vsel %vm1015, %v1344, 0
        %1348 = vmatprep.subr.mxu0 0.0
        %1349 = vmatpush1.msra.mxu0 %v1263
        %1350 = vmatprep.subr.mxu0 0.0
        %1351 = vmatpush1.msra.mxu0 0.0
        %1352 = vmatprep.subr.mxu0 0.0
        %1353 = vmatpush1.msra.mxu0 0.0
        %1354 = vmatprep.subr.mxu0 0.0
        %1355 = vmatpush1.msra.mxu0 0.0
        %1356 = vmatprep.subr.mxu0 0.0
        %1357 = vmatpush1.msra.mxu0 0.0
        %1358 = vmatprep.subr.mxu0 0.0
        %1359 = vmatpush1.msra.mxu0 0.0
        %1360 = vmatprep.subr.mxu0 0.0
        %1361 = vmatpush1.msra.mxu0 0.0
        %1362 = vmatprep.subr.mxu0 0.0
        %1363 = vmatpush1.msra.mxu0 0.0
        %1364 = vmatprep.subr.mxu0 0.0
        %1365 = vmatpush1.msra.mxu0 0.0
        %1366 = vmatprep.subr.mxu0 0.0
        %1367 = vmatpush1.msra.mxu0 0.0
        %1368 = vmatprep.subr.mxu0 0.0
        %1369 = vmatpush1.msra.mxu0 0.0
        %1370 = vmatprep.subr.mxu0 0.0
        %1371 = vmatpush1.msra.mxu0 0.0
        %1372 = vmatprep.subr.mxu0 0.0
        %1373 = vmatpush1.msra.mxu0 0.0
        %1374 = vmatprep.subr.mxu0 0.0
        %1375 = vmatpush1.msra.mxu0 0.0
        %1376 = vmatprep.subr.mxu0 0.0
        %1377 = vmatpush1.msra.mxu0 0.0
        %1378 = vmatprep.subr.mxu0 0.0
        %1379 = vmatpush1.msra.mxu0 0.0
        %1380 = vmatprep.subr.mxu0 0.0
        %1381 = vmatpush1.msra.mxu0 0.0
        %1382 = vmatprep.subr.mxu0 0.0
        %1383 = vmatpush1.msra.mxu0 0.0
        %1384 = vmatprep.subr.mxu0 0.0
        %1385 = vmatpush1.msra.mxu0 0.0
        %1386 = vmatprep.subr.mxu0 0.0
        %1387 = vmatpush1.msra.mxu0 0.0
        %1388 = vmatprep.subr.mxu0 0.0
        %1389 = vmatpush1.msra.mxu0 0.0
        %1390 = vmatprep.subr.mxu0 0.0
        %1391 = vmatpush1.msra.mxu0 0.0
        %1392 = vmatprep.subr.mxu0 0.0
        %1393 = vmatpush1.msra.mxu0 0.0
        %1394 = vmatprep.subr.mxu0 0.0
        %1395 = vmatpush1.msra.mxu0 0.0
        %1396 = vmatprep.subr.mxu0 0.0
        %1397 = vmatpush1.msra.mxu0 0.0
        %1398 = vmatprep.subr.mxu0 0.0
        %1399 = vmatpush1.msra.mxu0 0.0
        %1400 = vmatprep.subr.mxu0 0.0
        %1401 = vmatpush1.msra.mxu0 0.0
        %1402 = vmatprep.subr.mxu0 0.0
        %1403 = vmatpush1.msra.mxu0 0.0
        %1404 = vmatprep.subr.mxu0 0.0
        %1405 = vmatpush1.msra.mxu0 0.0
        %1406 = vmatprep.subr.mxu0 0.0
        %1407 = vmatpush1.msra.mxu0 0.0
        %1408 = vmatprep.subr.mxu0 0.0
        %1409 = vmatpush1.msra.mxu0 0.0
        %1410 = vmatprep.subr.mxu0 0.0
        %1411 = vmatpush1.msra.mxu0 0.0
        %1412 = vmatprep.mubr.f32.mxu0 0.0
        %1413 = vmatmul.mubr.f32.gmra.mrb[0].mxu0 %v1346
        %v1414 = vpop.f32.mrb[0].mxu0
        %v1415 = vadd.f32 0.0, %v1414
        %v1416 = vpop.f32.mrb[0].mxu0
        %1417 = vdwg.mxu0
        %1418 = vst [vmem:[#allocation3 + $0x10] sm:$0xff] %v1415
        %v1419 = vld [vmem:[%s371] sm:$0xff]
        %v1420 = vadd.f32 %v1419, %v1344
        %1421 = vst.msk [vmem:[%s371] sm:$0xff] %vm1015, %v1420
        %v1422 = vld [vmem:[#allocation2 + $0x18] sm:$0xff]
        %v1423 = vld [vmem:[#allocation2 + $0x38] sm:$0xff]
        %1424 = vmatprep.subr.mxu0 0.0
        %1425 = vmatpush1.xpose.msra.mxu0 %v1422
        %1426 = vmatprep.subr.mxu0 0.0
        %1427 = vmatpush1.xpose.msra.mxu0 0.0
        %1428 = vmatprep.subr.mxu0 0.0
        %1429 = vmatpush1.xpose.msra.mxu0 0.0
        %1430 = vmatprep.subr.mxu0 0.0
        %1431 = vmatpush1.xpose.msra.mxu0 0.0
        %1432 = vmatprep.subr.mxu0 0.0
        %1433 = vmatpush1.xpose.msra.mxu0 0.0
        %1434 = vmatprep.subr.mxu0 0.0
        %1435 = vmatpush1.xpose.msra.mxu0 0.0
        %1436 = vmatprep.subr.mxu0 0.0
        %1437 = vmatpush1.xpose.msra.mxu0 0.0
        %1438 = vmatprep.subr.mxu0 0.0
        %1439 = vmatpush1.xpose.msra.mxu0 0.0
        %1440 = vmatprep.subr.mxu0 0.0
        %1441 = vmatpush1.xpose.msra.mxu0 0.0
        %1442 = vmatprep.subr.mxu0 0.0
        %1443 = vmatpush1.xpose.msra.mxu0 0.0
        %1444 = vmatprep.subr.mxu0 0.0
        %1445 = vmatpush1.xpose.msra.mxu0 0.0
        %1446 = vmatprep.subr.mxu0 0.0
        %1447 = vmatpush1.xpose.msra.mxu0 0.0
        %1448 = vmatprep.subr.mxu0 0.0
        %1449 = vmatpush1.xpose.msra.mxu0 0.0
        %1450 = vmatprep.subr.mxu0 0.0
        %1451 = vmatpush1.xpose.msra.mxu0 0.0
        %1452 = vmatprep.subr.mxu0 0.0
        %1453 = vmatpush1.xpose.msra.mxu0 0.0
        %1454 = vmatprep.subr.mxu0 0.0
        %1455 = vmatpush1.xpose.msra.mxu0 0.0
        %1456 = vmatprep.subr.mxu0 0.0
        %1457 = vmatpush1.xpose.msra.mxu0 0.0
        %1458 = vmatprep.subr.mxu0 0.0
        %1459 = vmatpush1.xpose.msra.mxu0 0.0
        %1460 = vmatprep.subr.mxu0 0.0
        %1461 = vmatpush1.xpose.msra.mxu0 0.0
        %1462 = vmatprep.subr.mxu0 0.0
        %1463 = vmatpush1.xpose.msra.mxu0 0.0
        %1464 = vmatprep.subr.mxu0 0.0
        %1465 = vmatpush1.xpose.msra.mxu0 0.0
        %1466 = vmatprep.subr.mxu0 0.0
        %1467 = vmatpush1.xpose.msra.mxu0 0.0
        %1468 = vmatprep.subr.mxu0 0.0
        %1469 = vmatpush1.xpose.msra.mxu0 0.0
        %1470 = vmatprep.subr.mxu0 0.0
        %1471 = vmatpush1.xpose.msra.mxu0 0.0
        %1472 = vmatprep.subr.mxu0 0.0
        %1473 = vmatpush1.xpose.msra.mxu0 0.0
        %1474 = vmatprep.subr.mxu0 0.0
        %1475 = vmatpush1.xpose.msra.mxu0 0.0
        %1476 = vmatprep.subr.mxu0 0.0
        %1477 = vmatpush1.xpose.msra.mxu0 0.0
        %1478 = vmatprep.subr.mxu0 0.0
        %1479 = vmatpush1.xpose.msra.mxu0 0.0
        %1480 = vmatprep.subr.mxu0 0.0
        %1481 = vmatpush1.xpose.msra.mxu0 0.0
        %1482 = vmatprep.subr.mxu0 0.0
        %1483 = vmatpush1.xpose.msra.mxu0 0.0
        %1484 = vmatprep.subr.mxu0 0.0
        %1485 = vmatpush1.xpose.msra.mxu0 0.0
        %1486 = vmatprep.subr.mxu0 0.0
        %1487 = vmatpush1.xpose.msra.mxu0 0.0
        %1488 = vmatprep.mubr.f32.mxu0 0.0
        %1489 = vmatmul.mubr.f32.gmra.mrb[0].mxu0 %v941
        %v1490 = vpop.f32.mrb[0].mxu0
        %v1491 = vadd.f32 0.0, %v1490
        %v1492 = vpop.f32.mrb[0].mxu0
        %1493 = vdwg.mxu0
        %v1494 = vsel %vm1015, %v1491, -inf
        %1495 = vmax.xlane.f32.xlu0 %v1494
        %v1496 = vpop.xlane.xlu0 %1495
        %v1497 = vsub.f32 %v1491, %v1496
        %v1498 = vmul.f32 %v1497, 1.442695
        %v1499 = vpow.pop %v1498
        %v1500 = vsel %vm1015, %v1499, 0.0
        %1501 = vadd.xlane.f32.xlu0 %v1500
        %v1502 = vpop.xlane.xlu0 %1501
        %v1503 = vrcp.pop %v1502
        %v1504 = vmul.f32 %v1499, %v1503
        %v1506 = vsel %vm1015, %v1504, 0
        %1508 = vmatprep.subr.mxu0 0.0
        %1509 = vmatpush1.msra.mxu0 %v1423
        %1510 = vmatprep.subr.mxu0 0.0
        %1511 = vmatpush1.msra.mxu0 0.0
        %1512 = vmatprep.subr.mxu0 0.0
        %1513 = vmatpush1.msra.mxu0 0.0
        %1514 = vmatprep.subr.mxu0 0.0
        %1515 = vmatpush1.msra.mxu0 0.0
        %1516 = vmatprep.subr.mxu0 0.0
        %1517 = vmatpush1.msra.mxu0 0.0
        %1518 = vmatprep.subr.mxu0 0.0
        %1519 = vmatpush1.msra.mxu0 0.0
        %1520 = vmatprep.subr.mxu0 0.0
        %1521 = vmatpush1.msra.mxu0 0.0
        %1522 = vmatprep.subr.mxu0 0.0
        %1523 = vmatpush1.msra.mxu0 0.0
        %1524 = vmatprep.subr.mxu0 0.0
        %1525 = vmatpush1.msra.mxu0 0.0
        %1526 = vmatprep.subr.mxu0 0.0
        %1527 = vmatpush1.msra.mxu0 0.0
        %1528 = vmatprep.subr.mxu0 0.0
        %1529 = vmatpush1.msra.mxu0 0.0
        %1530 = vmatprep.subr.mxu0 0.0
        %1531 = vmatpush1.msra.mxu0 0.0
        %1532 = vmatprep.subr.mxu0 0.0
        %1533 = vmatpush1.msra.mxu0 0.0
        %1534 = vmatprep.subr.mxu0 0.0
        %1535 = vmatpush1.msra.mxu0 0.0
        %1536 = vmatprep.subr.mxu0 0.0
        %1537 = vmatpush1.msra.mxu0 0.0
        %1538 = vmatprep.subr.mxu0 0.0
        %1539 = vmatpush1.msra.mxu0 0.0
        %1540 = vmatprep.subr.mxu0 0.0
        %1541 = vmatpush1.msra.mxu0 0.0
        %1542 = vmatprep.subr.mxu0 0.0
        %1543 = vmatpush1.msra.mxu0 0.0
        %1544 = vmatprep.subr.mxu0 0.0
        %1545 = vmatpush1.msra.mxu0 0.0
        %1546 = vmatprep.subr.mxu0 0.0
        %1547 = vmatpush1.msra.mxu0 0.0
        %1548 = vmatprep.subr.mxu0 0.0
        %1549 = vmatpush1.msra.mxu0 0.0
        %1550 = vmatprep.subr.mxu0 0.0
        %1551 = vmatpush1.msra.mxu0 0.0
        %1552 = vmatprep.subr.mxu0 0.0
        %1553 = vmatpush1.msra.mxu0 0.0
        %1554 = vmatprep.subr.mxu0 0.0
        %1555 = vmatpush1.msra.mxu0 0.0
        %1556 = vmatprep.subr.mxu0 0.0
        %1557 = vmatpush1.msra.mxu0 0.0
        %1558 = vmatprep.subr.mxu0 0.0
        %1559 = vmatpush1.msra.mxu0 0.0
        %1560 = vmatprep.subr.mxu0 0.0
        %1561 = vmatpush1.msra.mxu0 0.0
        %1562 = vmatprep.subr.mxu0 0.0
        %1563 = vmatpush1.msra.mxu0 0.0
        %1564 = vmatprep.subr.mxu0 0.0
        %1565 = vmatpush1.msra.mxu0 0.0
        %1566 = vmatprep.subr.mxu0 0.0
        %1567 = vmatpush1.msra.mxu0 0.0
        %1568 = vmatprep.subr.mxu0 0.0
        %1569 = vmatpush1.msra.mxu0 0.0
        %1570 = vmatprep.subr.mxu0 0.0
        %1571 = vmatpush1.msra.mxu0 0.0
        %1572 = vmatprep.mubr.f32.mxu0 0.0
        %1573 = vmatmul.mubr.f32.gmra.mrb[0].mxu0 %v1506
        %v1574 = vpop.f32.mrb[0].mxu0
        %v1575 = vadd.f32 0.0, %v1574
        %v1576 = vpop.f32.mrb[0].mxu0
        %1577 = vdwg.mxu0
        %1578 = vst [vmem:[#allocation3 + $0x18] sm:$0xff] %v1575
        %v1579 = vld [vmem:[%s371] sm:$0xff]
        %v1580 = vadd.f32 %v1579, %v1504
        %v1581 = vmul.f32 %v1580, 0.25
        %1582 = vst.msk [vmem:[%s371] sm:$0xff] %vm1015, %v1581
        %v1583 = vld [vmem:[#allocation3] sm:$0xff]
        %v1584 = vld [vmem:[#allocation3 + $0x8] sm:$0xff]
        %v1585 = vld [vmem:[#allocation3 + $0x10] sm:$0xff]
        %v1586 = vld [vmem:[#allocation3 + $0x18] sm:$0xff]
        %v1587 = vld [vmem:[%s6] sm:$0xff]
        %v1588 = vld [vmem:[%s6 + $0x8] sm:$0xff]
        %v1589 = vld [vmem:[%s6 + $0x10] sm:$0xff]
        %v1590 = vld [vmem:[%s6 + $0x18] sm:$0xff]
        %v1591 = vld [vmem:[%s6 + $0x20] sm:$0xff]
        %v1592 = vld [vmem:[%s6 + $0x28] sm:$0xff]
        %v1593 = vld [vmem:[%s6 + $0x30] sm:$0xff]
        %v1594 = vld [vmem:[%s6 + $0x38] sm:$0xff]
        %v1595 = vld [vmem:[%s6 + $0x40] sm:$0xff]
        %v1596 = vld [vmem:[%s6 + $0x48] sm:$0xff]
        %v1597 = vld [vmem:[%s6 + $0x50] sm:$0xff]
        %v1598 = vld [vmem:[%s6 + $0x58] sm:$0xff]
        %v1599 = vld [vmem:[%s6 + $0x60] sm:$0xff]
        %v1600 = vld [vmem:[%s6 + $0x68] sm:$0xff]
        %v1601 = vld [vmem:[%s6 + $0x70] sm:$0xff]
        %v1602 = vld [vmem:[%s6 + $0x78] sm:$0xff]
        %v1603 = vld [vmem:[%s6 + $0x80] sm:$0xff]
        %v1604 = vld [vmem:[%s6 + $0x88] sm:$0xff]
        %v1605 = vld [vmem:[%s6 + $0x90] sm:$0xff]
        %v1606 = vld [vmem:[%s6 + $0x98] sm:$0xff]
        %v1607 = vld [vmem:[%s6 + $0xa0] sm:$0xff]
        %v1608 = vld [vmem:[%s6 + $0xa8] sm:$0xff]
        %v1609 = vld [vmem:[%s6 + $0xb0] sm:$0xff]
        %v1610 = vld [vmem:[%s6 + $0xb8] sm:$0xff]
        %v1611 = vld [vmem:[%s6 + $0xc0] sm:$0xff]
        %v1612 = vld [vmem:[%s6 + $0xc8] sm:$0xff]
        %v1613 = vld [vmem:[%s6 + $0xd0] sm:$0xff]
        %v1614 = vld [vmem:[%s6 + $0xd8] sm:$0xff]
        %v1615 = vld [vmem:[%s6 + $0xe0] sm:$0xff]
        %v1616 = vld [vmem:[%s6 + $0xe8] sm:$0xff]
        %v1617 = vld [vmem:[%s6 + $0xf0] sm:$0xff]
        %v1618 = vld [vmem:[%s6 + $0xf8] sm:$0xff]
        %v1619 = vld [vmem:[%s6 + $0x100] sm:$0xff]
        %v1620 = vld [vmem:[%s6 + $0x108] sm:$0xff]
        %v1621 = vld [vmem:[%s6 + $0x110] sm:$0xff]
        %v1622 = vld [vmem:[%s6 + $0x118] sm:$0xff]
        %v1623 = vld [vmem:[%s6 + $0x120] sm:$0xff]
        %v1624 = vld [vmem:[%s6 + $0x128] sm:$0xff]
        %v1625 = vld [vmem:[%s6 + $0x130] sm:$0xff]
        %v1626 = vld [vmem:[%s6 + $0x138] sm:$0xff]
        %v1627 = vld [vmem:[%s6 + $0x140] sm:$0xff]
        %v1628 = vld [vmem:[%s6 + $0x148] sm:$0xff]
        %v1629 = vld [vmem:[%s6 + $0x150] sm:$0xff]
        %v1630 = vld [vmem:[%s6 + $0x158] sm:$0xff]
        %v1631 = vld [vmem:[%s6 + $0x160] sm:$0xff]
        %v1632 = vld [vmem:[%s6 + $0x168] sm:$0xff]
        %v1633 = vld [vmem:[%s6 + $0x170] sm:$0xff]
        %v1634 = vld [vmem:[%s6 + $0x178] sm:$0xff]
        %v1635 = vld [vmem:[%s6 + $0x180] sm:$0xff]
        %v1636 = vld [vmem:[%s6 + $0x188] sm:$0xff]
        %v1637 = vld [vmem:[%s6 + $0x190] sm:$0xff]
        %v1638 = vld [vmem:[%s6 + $0x198] sm:$0xff]
        %v1639 = vld [vmem:[%s6 + $0x1a0] sm:$0xff]
        %v1640 = vld [vmem:[%s6 + $0x1a8] sm:$0xff]
        %v1641 = vld [vmem:[%s6 + $0x1b0] sm:$0xff]
        %v1642 = vld [vmem:[%s6 + $0x1b8] sm:$0xff]
        %v1643 = vld [vmem:[%s6 + $0x1c0] sm:$0xff]
        %v1644 = vld [vmem:[%s6 + $0x1c8] sm:$0xff]
        %v1645 = vld [vmem:[%s6 + $0x1d0] sm:$0xff]
        %v1646 = vld [vmem:[%s6 + $0x1d8] sm:$0xff]
        %v1647 = vld [vmem:[%s6 + $0x1e0] sm:$0xff]
        %v1648 = vld [vmem:[%s6 + $0x1e8] sm:$0xff]
        %v1649 = vld [vmem:[%s6 + $0x1f0] sm:$0xff]
        %v1650 = vld [vmem:[%s6 + $0x1f8] sm:$0xff]
        %v1651 = vld [vmem:[%s7] sm:$0x1]
        %v1653 = vlaneseq
        %v1654 = vshrl.u32 %v1653, 7
        %v1655 = vsub.s32 0, %v1654
        %v1656 = vrot.slane %v1651, %v1655
        %1658 = vmatprep.subr.mxu0 0.0
        %1659 = vmatpush1.msra.mxu0 %v1587
        %1660 = vmatprep.subr.mxu0 0.0
        %1661 = vmatpush1.msra.mxu0 %v1588
        %1662 = vmatprep.subr.mxu0 0.0
        %1663 = vmatpush1.msra.mxu0 %v1589
        %1664 = vmatprep.subr.mxu0 0.0
        %1665 = vmatpush1.msra.mxu0 %v1590
        %1666 = vmatprep.subr.mxu0 0.0
        %1667 = vmatpush1.msra.mxu0 %v1591
        %1668 = vmatprep.subr.mxu0 0.0
        %1669 = vmatpush1.msra.mxu0 %v1592
        %1670 = vmatprep.subr.mxu0 0.0
        %1671 = vmatpush1.msra.mxu0 %v1593
        %1672 = vmatprep.subr.mxu0 0.0
        %1673 = vmatpush1.msra.mxu0 %v1594
        %1674 = vmatprep.subr.mxu0 0.0
        %1675 = vmatpush1.msra.mxu0 %v1595
        %1676 = vmatprep.subr.mxu0 0.0
        %1677 = vmatpush1.msra.mxu0 %v1596
        %1678 = vmatprep.subr.mxu0 0.0
        %1679 = vmatpush1.msra.mxu0 %v1597
        %1680 = vmatprep.subr.mxu0 0.0
        %1681 = vmatpush1.msra.mxu0 %v1598
        %1682 = vmatprep.subr.mxu0 0.0
        %1683 = vmatpush1.msra.mxu0 %v1599
        %1684 = vmatprep.subr.mxu0 0.0
        %1685 = vmatpush1.msra.mxu0 %v1600
        %1686 = vmatprep.subr.mxu0 0.0
        %1687 = vmatpush1.msra.mxu0 %v1601
        %1688 = vmatprep.subr.mxu0 0.0
        %1689 = vmatpush1.msra.mxu0 %v1602
        %1690 = vmatprep.subr.mxu0 0.0
        %1691 = vmatpush1.msra.mxu0 %v1603
        %1692 = vmatprep.subr.mxu0 0.0
        %1693 = vmatpush1.msra.mxu0 %v1604
        %1694 = vmatprep.subr.mxu0 0.0
        %1695 = vmatpush1.msra.mxu0 %v1605
        %1696 = vmatprep.subr.mxu0 0.0
        %1697 = vmatpush1.msra.mxu0 %v1606
        %1698 = vmatprep.subr.mxu0 0.0
        %1699 = vmatpush1.msra.mxu0 %v1607
        %1700 = vmatprep.subr.mxu0 0.0
        %1701 = vmatpush1.msra.mxu0 %v1608
        %1702 = vmatprep.subr.mxu0 0.0
        %1703 = vmatpush1.msra.mxu0 %v1609
        %1704 = vmatprep.subr.mxu0 0.0
        %1705 = vmatpush1.msra.mxu0 %v1610
        %1706 = vmatprep.subr.mxu0 0.0
        %1707 = vmatpush1.msra.mxu0 %v1611
        %1708 = vmatprep.subr.mxu0 0.0
        %1709 = vmatpush1.msra.mxu0 %v1612
        %1710 = vmatprep.subr.mxu0 0.0
        %1711 = vmatpush1.msra.mxu0 %v1613
        %1712 = vmatprep.subr.mxu0 0.0
        %1713 = vmatpush1.msra.mxu0 %v1614
        %1714 = vmatprep.subr.mxu0 0.0
        %1715 = vmatpush1.msra.mxu0 %v1615
        %1716 = vmatprep.subr.mxu0 0.0
        %1717 = vmatpush1.msra.mxu0 %v1616
        %1718 = vmatprep.subr.mxu0 0.0
        %1719 = vmatpush1.msra.mxu0 %v1617
        %1720 = vmatprep.subr.mxu0 0.0
        %1721 = vmatpush1.msra.mxu0 %v1618
        %1722 = vmatprep.mubr.f32.mxu0 %v1584
        %1723 = vmatmul.mubr.f32.gmra.mrb[0].mxu0 %v1583
        %v1724 = vpop.f32.mrb[0].mxu0
        %v1725 = vadd.f32 %v1656, %v1724
        %v1726 = vpop.f32.mrb[0].mxu0
        %1727 = vdwg.mxu0
        %1728 = vmatprep.subr.mxu0 0.0
        %1729 = vmatpush1.msra.mxu0 %v1619
        %1730 = vmatprep.subr.mxu0 0.0
        %1731 = vmatpush1.msra.mxu0 %v1620
        %1732 = vmatprep.subr.mxu0 0.0
        %1733 = vmatpush1.msra.mxu0 %v1621
        %1734 = vmatprep.subr.mxu0 0.0
        %1735 = vmatpush1.msra.mxu0 %v1622
        %1736 = vmatprep.subr.mxu0 0.0
        %1737 = vmatpush1.msra.mxu0 %v1623
        %1738 = vmatprep.subr.mxu0 0.0
        %1739 = vmatpush1.msra.mxu0 %v1624
        %1740 = vmatprep.subr.mxu0 0.0
        %1741 = vmatpush1.msra.mxu0 %v1625
        %1742 = vmatprep.subr.mxu0 0.0
        %1743 = vmatpush1.msra.mxu0 %v1626
        %1744 = vmatprep.subr.mxu0 0.0
        %1745 = vmatpush1.msra.mxu0 %v1627
        %1746 = vmatprep.subr.mxu0 0.0
        %1747 = vmatpush1.msra.mxu0 %v1628
        %1748 = vmatprep.subr.mxu0 0.0
        %1749 = vmatpush1.msra.mxu0 %v1629
        %1750 = vmatprep.subr.mxu0 0.0
        %1751 = vmatpush1.msra.mxu0 %v1630
        %1752 = vmatprep.subr.mxu0 0.0
        %1753 = vmatpush1.msra.mxu0 %v1631
        %1754 = vmatprep.subr.mxu0 0.0
        %1755 = vmatpush1.msra.mxu0 %v1632
        %1756 = vmatprep.subr.mxu0 0.0
        %1757 = vmatpush1.msra.mxu0 %v1633
        %1758 = vmatprep.subr.mxu0 0.0
        %1759 = vmatpush1.msra.mxu0 %v1634
        %1760 = vmatprep.subr.mxu0 0.0
        %1761 = vmatpush1.msra.mxu0 %v1635
        %1762 = vmatprep.subr.mxu0 0.0
        %1763 = vmatpush1.msra.mxu0 %v1636
        %1764 = vmatprep.subr.mxu0 0.0
        %1765 = vmatpush1.msra.mxu0 %v1637
        %1766 = vmatprep.subr.mxu0 0.0
        %1767 = vmatpush1.msra.mxu0 %v1638
        %1768 = vmatprep.subr.mxu0 0.0
        %1769 = vmatpush1.msra.mxu0 %v1639
        %1770 = vmatprep.subr.mxu0 0.0
        %1771 = vmatpush1.msra.mxu0 %v1640
        %1772 = vmatprep.subr.mxu0 0.0
        %1773 = vmatpush1.msra.mxu0 %v1641
        %1774 = vmatprep.subr.mxu0 0.0
        %1775 = vmatpush1.msra.mxu0 %v1642
        %1776 = vmatprep.subr.mxu0 0.0
        %1777 = vmatpush1.msra.mxu0 %v1643
        %1778 = vmatprep.subr.mxu0 0.0
        %1779 = vmatpush1.msra.mxu0 %v1644
        %1780 = vmatprep.subr.mxu0 0.0
        %1781 = vmatpush1.msra.mxu0 %v1645
        %1782 = vmatprep.subr.mxu0 0.0
        %1783 = vmatpush1.msra.mxu0 %v1646
        %1784 = vmatprep.subr.mxu0 0.0
        %1785 = vmatpush1.msra.mxu0 %v1647
        %1786 = vmatprep.subr.mxu0 0.0
        %1787 = vmatpush1.msra.mxu0 %v1648
        %1788 = vmatprep.subr.mxu0 0.0
        %1789 = vmatpush1.msra.mxu0 %v1649
        %1790 = vmatprep.subr.mxu0 0.0
        %1791 = vmatpush1.msra.mxu0 %v1650
        %1792 = vmatprep.mubr.f32.mxu0 %v1586
        %1793 = vmatmul.mubr.f32.gmra.mrb[0].mxu0 %v1585
        %v1794 = vpop.f32.mrb[0].mxu0
        %v1795 = vadd.f32 %v1725, %v1794
        %v1796 = vpop.f32.mrb[0].mxu0
        %1797 = vdwg.mxu0
        %1798 = vst.msk [vmem:[%s364] sm:$0xff] %vm797, %v1795
        %s1799 = sand.u32 %s229, 1
        %s1800 = scalar_lea.sflag [#allocation5], %s1799
        %s1801 = sand.u32 %s229, 1
        %s1802 = smul.addr %s1801, 8
        %s1803 = scalar_lea.vmem [#allocation4], %s1802
        %s1804 = sand.u32 %s257, 1
        %s1805 = scalar_lea.sflag [#allocation7], %s1804
        %s1806 = sand.u32 %s257, 1
        %s1807 = smul.addr %s1806, 8
        %s1808 = scalar_lea.vmem [#allocation6], %s1807
        // Predicated region
        $region57: #{tpu_custom_call.1} parent=51 // pred_check
          %p1809 = pneg %p239
        $region58: #{tpu_custom_call.1} parent=51 // pred_check_branch
          %1811 = sbr.rel (%p1809) target = $region60
        $region59: #{tpu_custom_call.1} parent=51 // pred_region
          %s1813 = ssub.s32 128, 128
          %1814 = vsyncadd %s1800, %s1813
          %s1815 = sadd.s32 %s32, %s31
          %s1816 = smul.addr %s1815, 128
          %s1817 = scalar_lea.hbm %s8, %s1816
          %s1819 = sshll.u32 %s1803, 4
          %s1820 = int_to_ptr.vmem [resolvable:$true] %s1819
          %1822 = dma.vmem_to_hbm [thread:$0]  %s1820, 128, %s1817, %s1800
        $region60: #{tpu_custom_call.1} parent=51 // pred_fallthru
          _
        // Predicated region
        $region61: #{tpu_custom_call.1} parent=51 // pred_check
          %p1823 = pneg %p267
        $region62: #{tpu_custom_call.1} parent=51 // pred_check_branch
          %1825 = sbr.rel (%p1823) target = $region64
        $region63: #{tpu_custom_call.1} parent=51 // pred_region
          %s1827 = ssub.s32 128, 128
          %1828 = vsyncadd %s1805, %s1827
          %s1829 = sadd.s32 %s32, %s31
          %s1830 = smul.addr %s1829, 128
          %s1831 = scalar_lea.hbm %s9, %s1830
          %s1833 = sshll.u32 %s1808, 4
          %s1834 = int_to_ptr.vmem [resolvable:$true] %s1833
          %1836 = dma.vmem_to_hbm [thread:$0]  %s1834, 128, %s1831, %s1805
        $region64: #{tpu_custom_call.1} parent=51 // pred_fallthru
          _
      $region52: #{tpu_custom_call.1} parent=5 // pred_fallthru
        _
      %p1837 = scmp.le.s32.totalorder 2, %s22
      // Predicated region
      $region65: #{tpu_custom_call.1} parent=5 // pred_check
        %p1838 = pneg %p1837
      $region66: #{tpu_custom_call.1} parent=5 // pred_check_branch
        %1840 = sbr.rel (%p1838) target = $region68
      $region67: #{tpu_custom_call.1} parent=5 // pred_region
        %s1841 = ssub.s32 %s22, 2
        // Predicated region
        $region69: #{tpu_custom_call.1} parent=67 // pred_check
          %p1842 = pneg %p245
        $region70: #{tpu_custom_call.1} parent=67 // pred_check_branch
          %1844 = sbr.rel (%p1842) target = $region72
        $region71: #{tpu_custom_call.1} parent=67 // pred_region
          %s1845 = sand.u32 %s230, 1
          %s1846 = scalar_lea.sflag [#allocation5], %s1845
          %s1847 = sand.u32 %s230, 1
          %s1848 = smul.addr %s1847, 8
          %s1849 = scalar_lea.vmem [#allocation4], %s1848
          %1850 = dma.done %s1846, 128
        $region72: #{tpu_custom_call.1} parent=67 // pred_fallthru
          _
        // Predicated region
        $region73: #{tpu_custom_call.1} parent=67 // pred_check
          %p1851 = pneg %p273
        $region74: #{tpu_custom_call.1} parent=67 // pred_check_branch
          %1853 = sbr.rel (%p1851) target = $region76
        $region75: #{tpu_custom_call.1} parent=67 // pred_region
          %s1854 = sand.u32 %s258, 1
          %s1855 = scalar_lea.sflag [#allocation7], %s1854
          %s1856 = sand.u32 %s258, 1
          %s1857 = smul.addr %s1856, 8
          %s1858 = scalar_lea.vmem [#allocation6], %s1857
          %1859 = dma.done %s1855, 128
        $region76: #{tpu_custom_call.1} parent=67 // pred_fallthru
          _
      $region68: #{tpu_custom_call.1} parent=5 // pred_fallthru
        _
    $region6: #{tpu_custom_call.1} parent=1 // loop_footer
      %s26 = sadd.s32 1, %s22
    $region7: #{tpu_custom_call.1} parent=1 // loop_footer_branch
      %21 = sbr.rel target = $region3
    $region8: #{tpu_custom_call.1} parent=1 // loop_exit
      _
    %1860 = vsyncpa [#allocation5], 1
    %s1861 = scalar_lea.sflag [#allocation5], 1
    %1862 = vsyncpa %s1861, 1
    %1863 = vsyncpa [#allocation7], 1
    %s1864 = scalar_lea.sflag [#allocation7], 1
    %1865 = vsyncpa %s1864, 1

</llo_original>
